<compile_context>
chip_gen: v7x
topology: tpu7x:2x2x1
jax: 0.10.0
libtpu: 0.0.40
codegen_flags: <defaults>
</compile_context>

<pallas_src>
import functools

import jax
import jax.numpy as jnp
from jax.experimental import pallas as pl
from jax.experimental.pallas import tpu as pltpu


# ----------------------------------------------------------------------------
# Model configuration (synthetic backbone/neck/head widths)
# ----------------------------------------------------------------------------
C_BACKBONE = 16
C_NECK = 8
NUM_CLASSES = 4
KERNEL_DIM = 8
FEAT_OUT = 8
HEAD_OUT = NUM_CLASSES + KERNEL_DIM          # cate | kernel stacked
STRIDES = (32, 16, 8, 4)                     # pyramid strides (coarse -> fine)
SCALES = (8, 4, 2, 1)                        # nearest-upsample factors to finest
MM_DTYPE = jnp.bfloat16                      # MXU operand dtype (f32 accumulate)


def _pad128(n):
    return ((n + 127) // 128) * 128


# ----------------------------------------------------------------------------
# The single fused Pallas kernel
# ----------------------------------------------------------------------------
def _first2023_fused_kernel(x_ref, xy_ref, wbT_ref, bb_ref, wnT_ref, bn_ref,
                            wfhT_ref, bh_ref, wfxyT_ref, bf_ref,
                            g0_ref, g1_ref, g2_ref,
                            o_head_ref, o_feat_ref, *, segs):
    """backbone -> neck -> (cate/kernel head | commuted feature head).

    Activations are channels-first (C, N); N = flattened (b, h, w) rows in the
    lane dimension, padded per level to multiples of 128 so all slices and
    stores stay tile-aligned and lane-dense.  Padded tail columns of o_head
    hold conv(bias)-junk and are sliced off by the wrapper.
    """
    x = x_ref[...]                                       # (3, total_w) f32
    bh = bh_ref[...]                                     # (HEAD_OUT, 1) f32
    g_refs = (g0_ref, g1_ref, g2_ref, None)              # coarse levels only

    # xy coordinate contribution seeds the f32 feature accumulator.
    feat = jnp.dot(wfxyT_ref[...], xy_ref[...].astype(MM_DTYPE),
                   preferred_element_type=jnp.float32)    # (FEAT_OUT, n_fine_pad)

    for i, (off, width) in enumerate(segs):
        xi = x[:, off:off + width].astype(MM_DTYPE)       # (3, width)
        # backbone level i: 1x1 conv + relu
        yi = jnp.dot(wbT_ref[i], xi, preferred_element_type=jnp.float32)
        yi = jnp.maximum(yi + bb_ref[i], 0.0).astype(MM_DTYPE)   # (C_BACKBONE, width)
        # neck level i: 1x1 conv + relu -> fuse[i]
        zi = jnp.dot(wnT_ref[i], yi, preferred_element_type=jnp.float32)
        zi = jnp.maximum(zi + bn_ref[i], 0.0).astype(MM_DTYPE)   # (C_NECK, width)

        # fused (feature | cate | kernel) head: one (20, C_NECK) MXU dot.
        hf = jnp.dot(wfhT_ref[i], zi, preferred_element_type=jnp.float32)  # (20, width)
        o_head_ref[:, off:off + width] = (hf[FEAT_OUT:] + bh).astype(o_head_ref.dtype)

        if g_refs[i] is None:
            # finest level: already at the target resolution (width == n_fine_pad)
            feat = feat + hf[:FEAT_OUT]
        else:
            # nearest-upsample via a wrapper-precomputed bf16 one-hot selection
            # matrix (rows past the valid columns are zero, so the padded-lane
            # junk in hf never reaches feat).
            feat = feat + jnp.dot(hf[:FEAT_OUT].astype(MM_DTYPE), g_refs[i][...],
                                  preferred_element_type=jnp.float32)

    o_feat_ref[...] = jnp.maximum(feat + bf_ref[...], 0.0).astype(o_feat_ref.dtype)


# ----------------------------------------------------------------------------
# Plain-JAX glue (one-time weight repack, input layout, output unpack)
# ----------------------------------------------------------------------------
def avg_pool_nchw(x, k):
    b, c, h, w = x.shape
    return x.reshape(b, c, h // k, k, w // k, k).mean(axis=(3, 5))


def init_params(key):
    ks = jax.random.split(key, 32)
    it = iter(ks)
    p = {}
    p["backbone_w"] = [0.1 * jax.random.normal(next(it), (3, C_BACKBONE)) for _ in range(4)]
    p["backbone_b"] = [0.01 * jax.random.normal(next(it), (C_BACKBONE,)) for _ in range(4)]
    p["neck_w"] = [0.1 * jax.random.normal(next(it), (C_BACKBONE, C_NECK)) for _ in range(4)]
    p["neck_b"] = [0.01 * jax.random.normal(next(it), (C_NECK,)) for _ in range(4)]
    p["head_cate_w"] = 0.1 * jax.random.normal(next(it), (C_NECK, NUM_CLASSES))
    p["head_cate_b"] = 0.01 * jax.random.normal(next(it), (NUM_CLASSES,))
    p["head_kernel_w"] = 0.1 * jax.random.normal(next(it), (C_NECK, KERNEL_DIM))
    p["head_kernel_b"] = 0.01 * jax.random.normal(next(it), (KERNEL_DIM,))
    # feature_head weight split along the concat axis: [xy(2) | a | b | c | d]
    p["fh_w_xy"] = 0.1 * jax.random.normal(next(it), (2, FEAT_OUT))
    p["fh_w_a"] = 0.1 * jax.random.normal(next(it), (C_NECK, FEAT_OUT))
    p["fh_w_b"] = 0.1 * jax.random.normal(next(it), (C_NECK, FEAT_OUT))
    p["fh_w_c"] = 0.1 * jax.random.normal(next(it), (C_NECK, FEAT_OUT))
    p["fh_w_d"] = 0.1 * jax.random.normal(next(it), (C_NECK, FEAT_OUT))
    p["fh_b"] = 0.01 * jax.random.normal(next(it), (FEAT_OUT,))
    return p


def prepare_params(p):
    """One-time repack into the fused-kernel layout (bf16, transposed, stacked)."""
    whT = jnp.concatenate([p["head_cate_w"], p["head_kernel_w"]], axis=1).T   # (12, 8)
    wfs = [p["fh_w_a"], p["fh_w_b"], p["fh_w_c"], p["fh_w_d"]]
    # per-level stacked head weight: [feature(8) ; cate+kernel(12)] x C_NECK
    wfhT = jnp.stack([jnp.concatenate([wf.T, whT], axis=0) for wf in wfs])    # (4, 20, 8)
    wxy_pad = jnp.concatenate(
        [p["fh_w_xy"], jnp.zeros((C_NECK - 2, FEAT_OUT), p["fh_w_xy"].dtype)], axis=0)
    return {
        "wbT": jnp.stack([w.T for w in p["backbone_w"]]).astype(MM_DTYPE),    # (4, 16, 3)
        "bb": jnp.stack(p["backbone_b"])[:, :, None],                         # (4, 16, 1)
        "wnT": jnp.stack([w.T for w in p["neck_w"]]).astype(MM_DTYPE),        # (4, 8, 16)
        "bn": jnp.stack(p["neck_b"])[:, :, None],                             # (4, 8, 1)
        "wfhT": wfhT.astype(MM_DTYPE),                                        # (4, 20, 8)
        "bh": jnp.concatenate([p["head_cate_b"], p["head_kernel_b"]])[:, None],  # (12, 1)
        "wfxyT": wxy_pad.T.astype(MM_DTYPE),                                  # (8, 8)
        "bf": p["fh_b"][:, None],                                             # (8, 1)
    }


def _nearest_gather_matrix(width, bsz, hi, wi, h3, w3, scale, n_fine_pad):
    """(width, n_fine_pad) bf16 one-hot matrix G with  fi @ G == nearest_up(fi).

    Built from a single (n_fine_pad,) destination-index vector (cheap integer
    work, wrapper-side) plus one broadcast compare; rows >= bsz*hi*wi and
    columns >= n_fine are all zero, so padded lanes never contribute.
    """
    n_fine = bsz * h3 * w3
    col = jnp.arange(n_fine_pad, dtype=jnp.int32)
    b = col // (h3 * w3)
    rem = col % (h3 * w3)
    hh = rem // w3
    ww = rem % w3
    src = b * (hi * wi) + (hh // scale) * wi + (ww // scale)
    src = jnp.where(col < n_fine, src, width)          # padded lanes select nothing
    rows = jnp.arange(width, dtype=jnp.int32)[:, None]
    return (rows == src[None, :]).astype(MM_DTYPE)


def first2023_forward(imgs, kp):
    """Eval forward of First2023 with type == '4' (no cv2 post-processing)."""
    bsz, cin, H, W = imgs.shape
    level_hw = [(H // s, W // s) for s in STRIDES]
    h3, w3 = level_hw[-1]
    n_fine = bsz * h3 * w3
    n_fine_pad = _pad128(n_fine)

    # ---- per-level segment layout inside the lane-dense slab
    segs, off = [], 0
    for (hi, wi) in level_hw:
        width = _pad128(bsz * hi * wi)
        segs.append((off, width))
        off += width
    total_w = off

    # ---- hierarchical stem pooling: one full-image read, then 2x pools
    pools = {4: avg_pool_nchw(imgs, 4)}
    for s in (8, 16, 32):
        pools[s] = avg_pool_nchw(pools[s // 2], 2)

    xs = []
    for (hi, wi), s, (_, width) in zip(level_hw, STRIDES, segs):
        x2 = pools[s].transpose(1, 0, 2, 3).reshape(cin, bsz * hi * wi)   # (3, n)
        xs.append(jnp.pad(x2, ((0, 0), (0, width - x2.shape[1]))))
    x_slab = jnp.concatenate(xs, axis=1)                                  # (3, total_w)

    # ---- type == '4' coordinate grid, bilinear x8 (half-pixel / align_corners=False)
    h0, w0 = level_hw[0]
    x_r = jnp.linspace(-1.0, 1.0, w0)
    y_r = jnp.linspace(-1.0, 1.0, h0)
    yy, xx = jnp.meshgrid(y_r, x_r, indexing="ij")
    xy0 = jnp.broadcast_to(jnp.stack([xx, yy])[None], (bsz, 2, h0, w0))
    xy = jax.image.resize(xy0, (bsz, 2, h3, w3), method="bilinear")
    xyT = xy.transpose(1, 0, 2, 3).reshape(2, n_fine)
    xyT = jnp.pad(xyT, ((0, C_NECK - 2), (0, n_fine_pad - n_fine)))       # (8, n_fine_pad)

    # ---- per-level nearest-upsample selection matrices (coarse levels only)
    gmats = [_nearest_gather_matrix(segs[i][1], bsz, level_hw[i][0], level_hw[i][1],
                                    h3, w3, SCALES[i], n_fine_pad)
             for i in range(3)]

    kernel = functools.partial(_first2023_fused_kernel, segs=tuple(segs))

    ins = (x_slab, xyT, kp["wbT"], kp["bb"], kp["wnT"], kp["bn"], kp["wfhT"],
           kp["bh"], kp["wfxyT"], kp["bf"], gmats[0], gmats[1], gmats[2])

    conv_flops = sum(2 * width * (cin * C_BACKBONE + C_BACKBONE * C_NECK
                                  + C_NECK * (HEAD_OUT + FEAT_OUT))
                     for _, width in segs)
    up_flops = sum(2 * FEAT_OUT * segs[i][1] * n_fine_pad for i in range(3))
    xy_flops = 2 * C_NECK * FEAT_OUT * n_fine_pad
    bytes_io = (sum(int(a.size) * a.dtype.itemsize for a in ins)
                + 4 * (HEAD_OUT * total_w + FEAT_OUT * n_fine_pad))

    vmem_spec = pl.BlockSpec(memory_space=pltpu.MemorySpace.VMEM)

    # One launch, whole-array VMEM blocks (optimal at this size: total work is
    # tiny and launch/pipeline overhead would dominate a gridded version).
    o_head, o_feat = pl.pallas_call(
        kernel,
        out_shape=(jax.ShapeDtypeStruct((HEAD_OUT, total_w), jnp.float32),
                   jax.ShapeDtypeStruct((FEAT_OUT, n_fine_pad), jnp.float32)),
        in_specs=[vmem_spec] * len(ins),
        out_specs=(vmem_spec, vmem_spec),
        cost_estimate=pl.CostEstimate(flops=conv_flops + up_flops + xy_flops,
                                      transcendentals=0,
                                      bytes_accessed=bytes_io),
    )(*ins)

    # ---- unpack back to the PyTorch NCHW convention
    features = o_feat[:, :n_fine].reshape(FEAT_OUT, bsz, h3, w3).transpose(1, 0, 2, 3)
    cates, kernels = [], []
    for (hi, wi), (seg_off, _) in zip(level_hw, segs):
        n = bsz * hi * wi
        blk = o_head[:, seg_off:seg_off + n].reshape(HEAD_OUT, bsz, hi, wi)
        blk = blk.transpose(1, 0, 2, 3)                                   # (B, 12, hi, wi)
        cates.append(blk[:, :NUM_CLASSES])
        kernels.append(blk[:, NUM_CLASSES:])

    return {"features": features, "cates": cates, "kernels": kernels}


if __name__ == "__main__":
    key = jax.random.PRNGKey(0)
    k_img, k_par = jax.random.split(key)
    imgs = jax.random.normal(k_img, (2, 3, 64, 64), dtype=jnp.float32)  # NCHW
    params = prepare_params(init_params(k_par))

    outputs = first2023_forward(imgs, params)
    jax.block_until_ready(outputs)

    assert outputs["features"].shape == (2, FEAT_OUT, 16, 16)
    assert outputs["cates"][0].shape == (2, NUM_CLASSES, 2, 2)
    assert outputs["kernels"][3].shape == (2, KERNEL_DIM, 16, 16)
    print("KERNEL_OK")
</pallas_src>

<mosaic_0001>
module attributes {stable_mosaic.version = 11 : i64} {
  func.func @_first2023_fused_kernel(%arg0: memref<3x896xf32, #tpu.memory_space<vmem>>, %arg1: memref<8x512xf32, #tpu.memory_space<vmem>>, %arg2: memref<4x16x3xbf16, #tpu.memory_space<vmem>>, %arg3: memref<4x16x1xf32, #tpu.memory_space<vmem>>, %arg4: memref<4x8x16xbf16, #tpu.memory_space<vmem>>, %arg5: memref<4x8x1xf32, #tpu.memory_space<vmem>>, %arg6: memref<4x20x8xbf16, #tpu.memory_space<vmem>>, %arg7: memref<12x1xf32, #tpu.memory_space<vmem>>, %arg8: memref<8x8xbf16, #tpu.memory_space<vmem>>, %arg9: memref<8x1xf32, #tpu.memory_space<vmem>>, %arg10: memref<128x512xbf16, #tpu.memory_space<vmem>>, %arg11: memref<128x512xbf16, #tpu.memory_space<vmem>>, %arg12: memref<128x512xbf16, #tpu.memory_space<vmem>>, %arg13: memref<12x896xf32, #tpu.memory_space<vmem>>, %arg14: memref<8x512xf32, #tpu.memory_space<vmem>>) attributes {dimension_semantics = [], scalar_prefetch = 0 : i64, scratch_operands = 0 : i64, tpu.core_type = #tpu.core_type<tc>} {
    %c0 = arith.constant 0 : index
    %c0_0 = arith.constant 0 : index
    %0 = vector.load %arg0[%c0, %c0_0] : memref<3x896xf32, #tpu.memory_space<vmem>>, vector<3x896xf32>
    %c0_1 = arith.constant 0 : index
    %c0_2 = arith.constant 0 : index
    %1 = vector.load %arg7[%c0_1, %c0_2] : memref<12x1xf32, #tpu.memory_space<vmem>>, vector<12x1xf32>
    %c0_3 = arith.constant 0 : index
    %c0_4 = arith.constant 0 : index
    %2 = vector.load %arg8[%c0_3, %c0_4] : memref<8x8xbf16, #tpu.memory_space<vmem>>, vector<8x8xbf16>
    %c0_5 = arith.constant 0 : index
    %c0_6 = arith.constant 0 : index
    %3 = vector.load %arg1[%c0_5, %c0_6] : memref<8x512xf32, #tpu.memory_space<vmem>>, vector<8x512xf32>
    %4 = arith.truncf %3 : vector<8x512xf32> to vector<8x512xbf16>
    %cst = arith.constant dense<0.000000e+00> : vector<8x512xf32>
    %5 = tpu.matmul %2, %4, %cst {dimension_numbers = #tpu.dot_dimension_numbers<[1], [0], [0], [1], [0, 0, 1, 1], [], []>} : vector<8x8xbf16>, vector<8x512xbf16>, vector<8x512xf32> -> vector<8x512xf32>
    %6 = vector.extract_strided_slice %0 {offsets = [0, 0], sizes = [3, 128], strides = [1, 1]} : vector<3x896xf32> to vector<3x128xf32>
    %7 = arith.truncf %6 : vector<3x128xf32> to vector<3x128xbf16>
    %c0_7 = arith.constant 0 : index
    %c0_8 = arith.constant 0 : index
    %c0_9 = arith.constant 0 : index
    %8 = vector.load %arg2[%c0_7, %c0_8, %c0_9] : memref<4x16x3xbf16, #tpu.memory_space<vmem>>, vector<1x16x3xbf16>
    %9 = vector.shape_cast %8 : vector<1x16x3xbf16> to vector<16x3xbf16>
    %cst_10 = arith.constant dense<0.000000e+00> : vector<16x128xf32>
    %10 = tpu.matmul %9, %7, %cst_10 {dimension_numbers = #tpu.dot_dimension_numbers<[1], [0], [0], [1], [0, 0, 1, 1], [], []>} : vector<16x3xbf16>, vector<3x128xbf16>, vector<16x128xf32> -> vector<16x128xf32>
    %c0_11 = arith.constant 0 : index
    %c0_12 = arith.constant 0 : index
    %c0_13 = arith.constant 0 : index
    %11 = vector.load %arg3[%c0_11, %c0_12, %c0_13] : memref<4x16x1xf32, #tpu.memory_space<vmem>>, vector<1x16x1xf32>
    %12 = vector.shape_cast %11 : vector<1x16x1xf32> to vector<16x1xf32>
    %13 = vector.broadcast %12 : vector<16x1xf32> to vector<16x128xf32>
    %14 = arith.addf %10, %13 : vector<16x128xf32>
    %cst_14 = arith.constant 0.000000e+00 : f32
    %15 = vector.broadcast %cst_14 : f32 to vector<16x128xf32>
    %16 = arith.maximumf %14, %15 : vector<16x128xf32>
    %17 = arith.truncf %16 : vector<16x128xf32> to vector<16x128xbf16>
    %c0_15 = arith.constant 0 : index
    %c0_16 = arith.constant 0 : index
    %c0_17 = arith.constant 0 : index
    %18 = vector.load %arg4[%c0_15, %c0_16, %c0_17] : memref<4x8x16xbf16, #tpu.memory_space<vmem>>, vector<1x8x16xbf16>
    %19 = vector.shape_cast %18 : vector<1x8x16xbf16> to vector<8x16xbf16>
    %cst_18 = arith.constant dense<0.000000e+00> : vector<8x128xf32>
    %20 = tpu.matmul %19, %17, %cst_18 {dimension_numbers = #tpu.dot_dimension_numbers<[1], [0], [0], [1], [0, 0, 1, 1], [], []>} : vector<8x16xbf16>, vector<16x128xbf16>, vector<8x128xf32> -> vector<8x128xf32>
    %c0_19 = arith.constant 0 : index
    %c0_20 = arith.constant 0 : index
    %c0_21 = arith.constant 0 : index
    %21 = vector.load %arg5[%c0_19, %c0_20, %c0_21] : memref<4x8x1xf32, #tpu.memory_space<vmem>>, vector<1x8x1xf32>
    %22 = vector.shape_cast %21 : vector<1x8x1xf32> to vector<8x1xf32>
    %23 = vector.broadcast %22 : vector<8x1xf32> to vector<8x128xf32>
    %24 = arith.addf %20, %23 : vector<8x128xf32>
    %cst_22 = arith.constant 0.000000e+00 : f32
    %25 = vector.broadcast %cst_22 : f32 to vector<8x128xf32>
    %26 = arith.maximumf %24, %25 : vector<8x128xf32>
    %27 = arith.truncf %26 : vector<8x128xf32> to vector<8x128xbf16>
    %c0_23 = arith.constant 0 : index
    %c0_24 = arith.constant 0 : index
    %c0_25 = arith.constant 0 : index
    %28 = vector.load %arg6[%c0_23, %c0_24, %c0_25] : memref<4x20x8xbf16, #tpu.memory_space<vmem>>, vector<1x20x8xbf16>
    %29 = vector.shape_cast %28 : vector<1x20x8xbf16> to vector<20x8xbf16>
    %cst_26 = arith.constant dense<0.000000e+00> : vector<20x128xf32>
    %30 = tpu.matmul %29, %27, %cst_26 {dimension_numbers = #tpu.dot_dimension_numbers<[1], [0], [0], [1], [0, 0, 1, 1], [], []>} : vector<20x8xbf16>, vector<8x128xbf16>, vector<20x128xf32> -> vector<20x128xf32>
    %31 = vector.extract_strided_slice %30 {offsets = [8, 0], sizes = [12, 128], strides = [1, 1]} : vector<20x128xf32> to vector<12x128xf32>
    %32 = vector.broadcast %1 : vector<12x1xf32> to vector<12x128xf32>
    %33 = arith.addf %31, %32 : vector<12x128xf32>
    %c0_27 = arith.constant 0 : index
    %c0_28 = arith.constant 0 : index
    %34 = vector.load %arg13[%c0_27, %c0_28] : memref<12x896xf32, #tpu.memory_space<vmem>>, vector<12x128xf32>
    tpu.vector_store %arg13[%c0_27, %c0_28], %33 {strides = array<i32>} : memref<12x896xf32, #tpu.memory_space<vmem>>, vector<12x128xf32>,
    %35 = vector.extract_strided_slice %30 {offsets = [0, 0], sizes = [8, 128], strides = [1, 1]} : vector<20x128xf32> to vector<8x128xf32>
    %36 = arith.truncf %35 : vector<8x128xf32> to vector<8x128xbf16>
    %c0_29 = arith.constant 0 : index
    %c0_30 = arith.constant 0 : index
    %37 = vector.load %arg10[%c0_29, %c0_30] : memref<128x512xbf16, #tpu.memory_space<vmem>>, vector<128x512xbf16>
    %cst_31 = arith.constant dense<0.000000e+00> : vector<8x512xf32>
    %38 = tpu.matmul %36, %37, %cst_31 {dimension_numbers = #tpu.dot_dimension_numbers<[1], [0], [0], [1], [0, 0, 1, 1], [], []>} : vector<8x128xbf16>, vector<128x512xbf16>, vector<8x512xf32> -> vector<8x512xf32>
    %39 = arith.addf %5, %38 : vector<8x512xf32>
    %40 = vector.extract_strided_slice %0 {offsets = [0, 128], sizes = [3, 128], strides = [1, 1]} : vector<3x896xf32> to vector<3x128xf32>
    %41 = arith.truncf %40 : vector<3x128xf32> to vector<3x128xbf16>
    %c1 = arith.constant 1 : index
    %c0_32 = arith.constant 0 : index
    %c0_33 = arith.constant 0 : index
    %42 = vector.load %arg2[%c1, %c0_32, %c0_33] : memref<4x16x3xbf16, #tpu.memory_space<vmem>>, vector<1x16x3xbf16>
    %43 = vector.shape_cast %42 : vector<1x16x3xbf16> to vector<16x3xbf16>
    %cst_34 = arith.constant dense<0.000000e+00> : vector<16x128xf32>
    %44 = tpu.matmul %43, %41, %cst_34 {dimension_numbers = #tpu.dot_dimension_numbers<[1], [0], [0], [1], [0, 0, 1, 1], [], []>} : vector<16x3xbf16>, vector<3x128xbf16>, vector<16x128xf32> -> vector<16x128xf32>
    %c1_35 = arith.constant 1 : index
    %c0_36 = arith.constant 0 : index
    %c0_37 = arith.constant 0 : index
    %45 = vector.load %arg3[%c1_35, %c0_36, %c0_37] : memref<4x16x1xf32, #tpu.memory_space<vmem>>, vector<1x16x1xf32>
    %46 = vector.shape_cast %45 : vector<1x16x1xf32> to vector<16x1xf32>
    %47 = vector.broadcast %46 : vector<16x1xf32> to vector<16x128xf32>
    %48 = arith.addf %44, %47 : vector<16x128xf32>
    %cst_38 = arith.constant 0.000000e+00 : f32
    %49 = vector.broadcast %cst_38 : f32 to vector<16x128xf32>
    %50 = arith.maximumf %48, %49 : vector<16x128xf32>
    %51 = arith.truncf %50 : vector<16x128xf32> to vector<16x128xbf16>
    %c1_39 = arith.constant 1 : index
    %c0_40 = arith.constant 0 : index
    %c0_41 = arith.constant 0 : index
    %52 = vector.load %arg4[%c1_39, %c0_40, %c0_41] : memref<4x8x16xbf16, #tpu.memory_space<vmem>>, vector<1x8x16xbf16>
    %53 = vector.shape_cast %52 : vector<1x8x16xbf16> to vector<8x16xbf16>
    %cst_42 = arith.constant dense<0.000000e+00> : vector<8x128xf32>
    %54 = tpu.matmul %53, %51, %cst_42 {dimension_numbers = #tpu.dot_dimension_numbers<[1], [0], [0], [1], [0, 0, 1, 1], [], []>} : vector<8x16xbf16>, vector<16x128xbf16>, vector<8x128xf32> -> vector<8x128xf32>
    %c1_43 = arith.constant 1 : index
    %c0_44 = arith.constant 0 : index
    %c0_45 = arith.constant 0 : index
    %55 = vector.load %arg5[%c1_43, %c0_44, %c0_45] : memref<4x8x1xf32, #tpu.memory_space<vmem>>, vector<1x8x1xf32>
    %56 = vector.shape_cast %55 : vector<1x8x1xf32> to vector<8x1xf32>
    %57 = vector.broadcast %56 : vector<8x1xf32> to vector<8x128xf32>
    %58 = arith.addf %54, %57 : vector<8x128xf32>
    %cst_46 = arith.constant 0.000000e+00 : f32
    %59 = vector.broadcast %cst_46 : f32 to vector<8x128xf32>
    %60 = arith.maximumf %58, %59 : vector<8x128xf32>
    %61 = arith.truncf %60 : vector<8x128xf32> to vector<8x128xbf16>
    %c1_47 = arith.constant 1 : index
    %c0_48 = arith.constant 0 : index
    %c0_49 = arith.constant 0 : index
    %62 = vector.load %arg6[%c1_47, %c0_48, %c0_49] : memref<4x20x8xbf16, #tpu.memory_space<vmem>>, vector<1x20x8xbf16>
    %63 = vector.shape_cast %62 : vector<1x20x8xbf16> to vector<20x8xbf16>
    %cst_50 = arith.constant dense<0.000000e+00> : vector<20x128xf32>
    %64 = tpu.matmul %63, %61, %cst_50 {dimension_numbers = #tpu.dot_dimension_numbers<[1], [0], [0], [1], [0, 0, 1, 1], [], []>} : vector<20x8xbf16>, vector<8x128xbf16>, vector<20x128xf32> -> vector<20x128xf32>
    %65 = vector.extract_strided_slice %64 {offsets = [8, 0], sizes = [12, 128], strides = [1, 1]} : vector<20x128xf32> to vector<12x128xf32>
    %66 = vector.broadcast %1 : vector<12x1xf32> to vector<12x128xf32>
    %67 = arith.addf %65, %66 : vector<12x128xf32>
    %c0_51 = arith.constant 0 : index
    %c128 = arith.constant 128 : index
    %68 = vector.load %arg13[%c0_51, %c128] : memref<12x896xf32, #tpu.memory_space<vmem>>, vector<12x128xf32>
    tpu.vector_store %arg13[%c0_51, %c128], %67 {strides = array<i32>} : memref<12x896xf32, #tpu.memory_space<vmem>>, vector<12x128xf32>,
    %69 = vector.extract_strided_slice %64 {offsets = [0, 0], sizes = [8, 128], strides = [1, 1]} : vector<20x128xf32> to vector<8x128xf32>
    %70 = arith.truncf %69 : vector<8x128xf32> to vector<8x128xbf16>
    %c0_52 = arith.constant 0 : index
    %c0_53 = arith.constant 0 : index
    %71 = vector.load %arg11[%c0_52, %c0_53] : memref<128x512xbf16, #tpu.memory_space<vmem>>, vector<128x512xbf16>
    %cst_54 = arith.constant dense<0.000000e+00> : vector<8x512xf32>
    %72 = tpu.matmul %70, %71, %cst_54 {dimension_numbers = #tpu.dot_dimension_numbers<[1], [0], [0], [1], [0, 0, 1, 1], [], []>} : vector<8x128xbf16>, vector<128x512xbf16>, vector<8x512xf32> -> vector<8x512xf32>
    %73 = arith.addf %39, %72 : vector<8x512xf32>
    %74 = vector.extract_strided_slice %0 {offsets = [0, 256], sizes = [3, 128], strides = [1, 1]} : vector<3x896xf32> to vector<3x128xf32>
    %75 = arith.truncf %74 : vector<3x128xf32> to vector<3x128xbf16>
    %c2 = arith.constant 2 : index
    %c0_55 = arith.constant 0 : index
    %c0_56 = arith.constant 0 : index
    %76 = vector.load %arg2[%c2, %c0_55, %c0_56] : memref<4x16x3xbf16, #tpu.memory_space<vmem>>, vector<1x16x3xbf16>
    %77 = vector.shape_cast %76 : vector<1x16x3xbf16> to vector<16x3xbf16>
    %cst_57 = arith.constant dense<0.000000e+00> : vector<16x128xf32>
    %78 = tpu.matmul %77, %75, %cst_57 {dimension_numbers = #tpu.dot_dimension_numbers<[1], [0], [0], [1], [0, 0, 1, 1], [], []>} : vector<16x3xbf16>, vector<3x128xbf16>, vector<16x128xf32> -> vector<16x128xf32>
    %c2_58 = arith.constant 2 : index
    %c0_59 = arith.constant 0 : index
    %c0_60 = arith.constant 0 : index
    %79 = vector.load %arg3[%c2_58, %c0_59, %c0_60] : memref<4x16x1xf32, #tpu.memory_space<vmem>>, vector<1x16x1xf32>
    %80 = vector.shape_cast %79 : vector<1x16x1xf32> to vector<16x1xf32>
    %81 = vector.broadcast %80 : vector<16x1xf32> to vector<16x128xf32>
    %82 = arith.addf %78, %81 : vector<16x128xf32>
    %cst_61 = arith.constant 0.000000e+00 : f32
    %83 = vector.broadcast %cst_61 : f32 to vector<16x128xf32>
    %84 = arith.maximumf %82, %83 : vector<16x128xf32>
    %85 = arith.truncf %84 : vector<16x128xf32> to vector<16x128xbf16>
    %c2_62 = arith.constant 2 : index
    %c0_63 = arith.constant 0 : index
    %c0_64 = arith.constant 0 : index
    %86 = vector.load %arg4[%c2_62, %c0_63, %c0_64] : memref<4x8x16xbf16, #tpu.memory_space<vmem>>, vector<1x8x16xbf16>
    %87 = vector.shape_cast %86 : vector<1x8x16xbf16> to vector<8x16xbf16>
    %cst_65 = arith.constant dense<0.000000e+00> : vector<8x128xf32>
    %88 = tpu.matmul %87, %85, %cst_65 {dimension_numbers = #tpu.dot_dimension_numbers<[1], [0], [0], [1], [0, 0, 1, 1], [], []>} : vector<8x16xbf16>, vector<16x128xbf16>, vector<8x128xf32> -> vector<8x128xf32>
    %c2_66 = arith.constant 2 : index
    %c0_67 = arith.constant 0 : index
    %c0_68 = arith.constant 0 : index
    %89 = vector.load %arg5[%c2_66, %c0_67, %c0_68] : memref<4x8x1xf32, #tpu.memory_space<vmem>>, vector<1x8x1xf32>
    %90 = vector.shape_cast %89 : vector<1x8x1xf32> to vector<8x1xf32>
    %91 = vector.broadcast %90 : vector<8x1xf32> to vector<8x128xf32>
    %92 = arith.addf %88, %91 : vector<8x128xf32>
    %cst_69 = arith.constant 0.000000e+00 : f32
    %93 = vector.broadcast %cst_69 : f32 to vector<8x128xf32>
    %94 = arith.maximumf %92, %93 : vector<8x128xf32>
    %95 = arith.truncf %94 : vector<8x128xf32> to vector<8x128xbf16>
    %c2_70 = arith.constant 2 : index
    %c0_71 = arith.constant 0 : index
    %c0_72 = arith.constant 0 : index
    %96 = vector.load %arg6[%c2_70, %c0_71, %c0_72] : memref<4x20x8xbf16, #tpu.memory_space<vmem>>, vector<1x20x8xbf16>
    %97 = vector.shape_cast %96 : vector<1x20x8xbf16> to vector<20x8xbf16>
    %cst_73 = arith.constant dense<0.000000e+00> : vector<20x128xf32>
    %98 = tpu.matmul %97, %95, %cst_73 {dimension_numbers = #tpu.dot_dimension_numbers<[1], [0], [0], [1], [0, 0, 1, 1], [], []>} : vector<20x8xbf16>, vector<8x128xbf16>, vector<20x128xf32> -> vector<20x128xf32>
    %99 = vector.extract_strided_slice %98 {offsets = [8, 0], sizes = [12, 128], strides = [1, 1]} : vector<20x128xf32> to vector<12x128xf32>
    %100 = vector.broadcast %1 : vector<12x1xf32> to vector<12x128xf32>
    %101 = arith.addf %99, %100 : vector<12x128xf32>
    %c0_74 = arith.constant 0 : index
    %c256 = arith.constant 256 : index
    %102 = vector.load %arg13[%c0_74, %c256] : memref<12x896xf32, #tpu.memory_space<vmem>>, vector<12x128xf32>
    tpu.vector_store %arg13[%c0_74, %c256], %101 {strides = array<i32>} : memref<12x896xf32, #tpu.memory_space<vmem>>, vector<12x128xf32>,
    %103 = vector.extract_strided_slice %98 {offsets = [0, 0], sizes = [8, 128], strides = [1, 1]} : vector<20x128xf32> to vector<8x128xf32>
    %104 = arith.truncf %103 : vector<8x128xf32> to vector<8x128xbf16>
    %c0_75 = arith.constant 0 : index
    %c0_76 = arith.constant 0 : index
    %105 = vector.load %arg12[%c0_75, %c0_76] : memref<128x512xbf16, #tpu.memory_space<vmem>>, vector<128x512xbf16>
    %cst_77 = arith.constant dense<0.000000e+00> : vector<8x512xf32>
    %106 = tpu.matmul %104, %105, %cst_77 {dimension_numbers = #tpu.dot_dimension_numbers<[1], [0], [0], [1], [0, 0, 1, 1], [], []>} : vector<8x128xbf16>, vector<128x512xbf16>, vector<8x512xf32> -> vector<8x512xf32>
    %107 = arith.addf %73, %106 : vector<8x512xf32>
    %108 = vector.extract_strided_slice %0 {offsets = [0, 384], sizes = [3, 512], strides = [1, 1]} : vector<3x896xf32> to vector<3x512xf32>
    %109 = arith.truncf %108 : vector<3x512xf32> to vector<3x512xbf16>
    %c3 = arith.constant 3 : index
    %c0_78 = arith.constant 0 : index
    %c0_79 = arith.constant 0 : index
    %110 = vector.load %arg2[%c3, %c0_78, %c0_79] : memref<4x16x3xbf16, #tpu.memory_space<vmem>>, vector<1x16x3xbf16>
    %111 = vector.shape_cast %110 : vector<1x16x3xbf16> to vector<16x3xbf16>
    %cst_80 = arith.constant dense<0.000000e+00> : vector<16x512xf32>
    %112 = tpu.matmul %111, %109, %cst_80 {dimension_numbers = #tpu.dot_dimension_numbers<[1], [0], [0], [1], [0, 0, 1, 1], [], []>} : vector<16x3xbf16>, vector<3x512xbf16>, vector<16x512xf32> -> vector<16x512xf32>
    %c3_81 = arith.constant 3 : index
    %c0_82 = arith.constant 0 : index
    %c0_83 = arith.constant 0 : index
    %113 = vector.load %arg3[%c3_81, %c0_82, %c0_83] : memref<4x16x1xf32, #tpu.memory_space<vmem>>, vector<1x16x1xf32>
    %114 = vector.shape_cast %113 : vector<1x16x1xf32> to vector<16x1xf32>
    %115 = vector.broadcast %114 : vector<16x1xf32> to vector<16x512xf32>
    %116 = arith.addf %112, %115 : vector<16x512xf32>
    %cst_84 = arith.constant 0.000000e+00 : f32
    %117 = vector.broadcast %cst_84 : f32 to vector<16x512xf32>
    %118 = arith.maximumf %116, %117 : vector<16x512xf32>
    %119 = arith.truncf %118 : vector<16x512xf32> to vector<16x512xbf16>
    %c3_85 = arith.constant 3 : index
    %c0_86 = arith.constant 0 : index
    %c0_87 = arith.constant 0 : index
    %120 = vector.load %arg4[%c3_85, %c0_86, %c0_87] : memref<4x8x16xbf16, #tpu.memory_space<vmem>>, vector<1x8x16xbf16>
    %121 = vector.shape_cast %120 : vector<1x8x16xbf16> to vector<8x16xbf16>
    %cst_88 = arith.constant dense<0.000000e+00> : vector<8x512xf32>
    %122 = tpu.matmul %121, %119, %cst_88 {dimension_numbers = #tpu.dot_dimension_numbers<[1], [0], [0], [1], [0, 0, 1, 1], [], []>} : vector<8x16xbf16>, vector<16x512xbf16>, vector<8x512xf32> -> vector<8x512xf32>
    %c3_89 = arith.constant 3 : index
    %c0_90 = arith.constant 0 : index
    %c0_91 = arith.constant 0 : index
    %123 = vector.load %arg5[%c3_89, %c0_90, %c0_91] : memref<4x8x1xf32, #tpu.memory_space<vmem>>, vector<1x8x1xf32>
    %124 = vector.shape_cast %123 : vector<1x8x1xf32> to vector<8x1xf32>
    %125 = vector.broadcast %124 : vector<8x1xf32> to vector<8x512xf32>
    %126 = arith.addf %122, %125 : vector<8x512xf32>
    %cst_92 = arith.constant 0.000000e+00 : f32
    %127 = vector.broadcast %cst_92 : f32 to vector<8x512xf32>
    %128 = arith.maximumf %126, %127 : vector<8x512xf32>
    %129 = arith.truncf %128 : vector<8x512xf32> to vector<8x512xbf16>
    %c3_93 = arith.constant 3 : index
    %c0_94 = arith.constant 0 : index
    %c0_95 = arith.constant 0 : index
    %130 = vector.load %arg6[%c3_93, %c0_94, %c0_95] : memref<4x20x8xbf16, #tpu.memory_space<vmem>>, vector<1x20x8xbf16>
    %131 = vector.shape_cast %130 : vector<1x20x8xbf16> to vector<20x8xbf16>
    %cst_96 = arith.constant dense<0.000000e+00> : vector<20x512xf32>
    %132 = tpu.matmul %131, %129, %cst_96 {dimension_numbers = #tpu.dot_dimension_numbers<[1], [0], [0], [1], [0, 0, 1, 1], [], []>} : vector<20x8xbf16>, vector<8x512xbf16>, vector<20x512xf32> -> vector<20x512xf32>
    %133 = vector.extract_strided_slice %132 {offsets = [8, 0], sizes = [12, 512], strides = [1, 1]} : vector<20x512xf32> to vector<12x512xf32>
    %134 = vector.broadcast %1 : vector<12x1xf32> to vector<12x512xf32>
    %135 = arith.addf %133, %134 : vector<12x512xf32>
    %c0_97 = arith.constant 0 : index
    %c384 = arith.constant 384 : index
    %136 = vector.load %arg13[%c0_97, %c384] : memref<12x896xf32, #tpu.memory_space<vmem>>, vector<12x512xf32>
    tpu.vector_store %arg13[%c0_97, %c384], %135 {strides = array<i32>} : memref<12x896xf32, #tpu.memory_space<vmem>>, vector<12x512xf32>,
    %137 = vector.extract_strided_slice %132 {offsets = [0, 0], sizes = [8, 512], strides = [1, 1]} : vector<20x512xf32> to vector<8x512xf32>
    %138 = arith.addf %107, %137 : vector<8x512xf32>
    %c0_98 = arith.constant 0 : index
    %c0_99 = arith.constant 0 : index
    %139 = vector.load %arg9[%c0_98, %c0_99] : memref<8x1xf32, #tpu.memory_space<vmem>>, vector<8x1xf32>
    %140 = vector.broadcast %139 : vector<8x1xf32> to vector<8x512xf32>
    %141 = arith.addf %138, %140 : vector<8x512xf32>
    %cst_100 = arith.constant 0.000000e+00 : f32
    %142 = vector.broadcast %cst_100 : f32 to vector<8x512xf32>
    %143 = arith.maximumf %141, %142 : vector<8x512xf32>
    %c0_101 = arith.constant 0 : index
    %c0_102 = arith.constant 0 : index
    %144 = vector.load %arg14[%c0_101, %c0_102] : memref<8x512xf32, #tpu.memory_space<vmem>>, vector<8x512xf32>
    tpu.vector_store %arg14[%c0_101, %c0_102], %143 {strides = array<i32>} : memref<8x512xf32, #tpu.memory_space<vmem>>, vector<8x512xf32>,
    return
  }
}

</mosaic_0001>

<llo_original>
// kernel: tpu_custom_call.1
$region0: #{tpu_custom_call.1}
  #allocation0 [shape = 'u32[]', space=smem, size = 0x4, offset = 0x4, fixed_abs, tag = 'smem constant byte address 0x4 - core index']
  #allocation1 [shape = 'u32[144,128]{1,0:T(1,128)}', space=vmem, size = 0x12000, scoped, tag = 'internal scratch']
  %s0 = inlined_call_operand.hbm [shape: f32[3,896], index: 0, kind: input, shape index: {}]
  %s1 = inlined_call_operand.hbm [shape: f32[8,512], index: 1, kind: input, shape index: {}]
  %s2 = inlined_call_operand.vmem [shape: bf16[4,16,3], index: 2, kind: input, shape index: {}]
  %s3 = inlined_call_operand.vmem [shape: f32[4,16,1], index: 3, kind: input, shape index: {}]
  %s4 = inlined_call_operand.hbm [shape: bf16[4,8,16], index: 4, kind: input, shape index: {}]
  %s5 = inlined_call_operand.vmem [shape: f32[4,8,1], index: 5, kind: input, shape index: {}]
  %s6 = inlined_call_operand.vmem [shape: bf16[4,20,8], index: 6, kind: input, shape index: {}]
  %s7 = inlined_call_operand.vmem [shape: f32[12,1], index: 7, kind: input, shape index: {}]
  %s8 = inlined_call_operand.vmem [shape: bf16[8,8], index: 8, kind: input, shape index: {}]
  %s9 = inlined_call_operand.vmem [shape: f32[8,1], index: 9, kind: input, shape index: {}]
  %s10 = inlined_call_operand.vmem [shape: bf16[128,512], index: 10, kind: input, shape index: {}]
  %s11 = inlined_call_operand.hbm [shape: bf16[128,512], index: 11, kind: input, shape index: {}]
  %s12 = inlined_call_operand.hbm [shape: bf16[128,512], index: 12, kind: input, shape index: {}]
  %s13 = inlined_call_operand.hbm [shape: f32[12,896], index: 13, kind: output, shape index: {0}]
  %s14 = inlined_call_operand.hbm [shape: f32[8,512], index: 14, kind: output, shape index: {1}]
  %15 = xla_tuple %s13, %s14
  %s16 = sld [smem:[#allocation0]]
  $region90: #{tpu_custom_call.1} parent=0
    _
  %s18 = ssub.s32 1, %s16
  %s19 = scalar_select 0, %s18, %s16
  $region1: #{tpu_custom_call.1} parent=0
    #allocation2 [shape = 'u8[14336]{0}', space=vmem, size = 0x3800, scoped, tag = 'input window, operand 0, single buffered']
    #allocation3 [shape = 's32[1]{0}', space=sflag, size = 0x4, scoped, tag = 'scoped memory for tpu_custom_call.1']
    #allocation4 [shape = 's32[1]{0}', space=sflag, size = 0x4, scoped, tag = 'scoped memory for tpu_custom_call.1']
    #allocation5 [shape = 'u8[16384]{0}', space=vmem, size = 0x4000, scoped, tag = 'input window, operand 1, single buffered']
    #allocation6 [shape = 's32[1]{0}', space=sflag, size = 0x4, scoped, tag = 'scoped memory for tpu_custom_call.1']
    #allocation7 [shape = 'u8[8192]{0}', space=vmem, size = 0x2000, scoped, tag = 'input window, operand 4, single buffered']
    #allocation8 [shape = 'u8[131072]{0}', space=vmem, size = 0x20000, scoped, tag = 'input window, operand 11, single buffered']
    #allocation9 [shape = 's32[1]{0}', space=sflag, size = 0x4, scoped, tag = 'scoped memory for tpu_custom_call.1']
    #allocation10 [shape = 'u8[131072]{0}', space=vmem, size = 0x20000, scoped, tag = 'input window, operand 12, single buffered']
    #allocation11 [shape = 'u8[57344]{0}', space=vmem, size = 0xe000, scoped, tag = 'output window, operand 0, single buffered']
    #allocation12 [shape = 'u8[16384]{0}', space=vmem, size = 0x4000, scoped, tag = 'output window, operand 1, single buffered']
    #allocation13 [shape = 's32[1]{0}', space=sflag, size = 0x4, scoped, tag = 'scoped memory for tpu_custom_call.1']
    %20 = vsyncpa [#allocation3], 0
    %21 = vsyncpa [#allocation6], 0
    %22 = vsyncpa [#allocation9], 0
    %23 = vsyncpa [#allocation4], 0
    %24 = vsyncpa [#allocation13], 0
    // Predicated region
    $region2: #{tpu_custom_call.1} parent=1 // pred_check
      _
    $region3: #{tpu_custom_call.1} parent=1 // pred_check_branch
      %26 = sbr.rel (0) target = $region5
    $region4: #{tpu_custom_call.1} parent=1 // pred_region
      %s28 = ssub.s32 448, 448
      %29 = vsyncadd [#allocation3], %s28
      %s31 = sshll.u32 [#allocation2], 4
      %s32 = int_to_ptr.vmem [resolvable:$true] %s31
      %34 = dma.hbm_to_vmem [thread:$0]  %s0, 448, %s32, [#allocation3]
    $region5: #{tpu_custom_call.1} parent=1 // pred_fallthru
      _
    // Predicated region
    $region6: #{tpu_custom_call.1} parent=1 // pred_check
      _
    $region7: #{tpu_custom_call.1} parent=1 // pred_check_branch
      %36 = sbr.rel (0) target = $region9
    $region8: #{tpu_custom_call.1} parent=1 // pred_region
      %s38 = ssub.s32 512, 512
      %39 = vsyncadd [#allocation6], %s38
      %s41 = sshll.u32 [#allocation5], 4
      %s42 = int_to_ptr.vmem [resolvable:$true] %s41
      %44 = dma.hbm_to_vmem [thread:$0]  %s1, 512, %s42, [#allocation6]
    $region9: #{tpu_custom_call.1} parent=1 // pred_fallthru
      _
    // Predicated region
    $region10: #{tpu_custom_call.1} parent=1 // pred_check
      _
    $region11: #{tpu_custom_call.1} parent=1 // pred_check_branch
      %46 = sbr.rel (0) target = $region13
    $region12: #{tpu_custom_call.1} parent=1 // pred_region
      _
    $region13: #{tpu_custom_call.1} parent=1 // pred_fallthru
      _
    // Predicated region
    $region14: #{tpu_custom_call.1} parent=1 // pred_check
      _
    $region15: #{tpu_custom_call.1} parent=1 // pred_check_branch
      %48 = sbr.rel (0) target = $region17
    $region16: #{tpu_custom_call.1} parent=1 // pred_region
      _
    $region17: #{tpu_custom_call.1} parent=1 // pred_fallthru
      _
    // Predicated region
    $region18: #{tpu_custom_call.1} parent=1 // pred_check
      _
    $region19: #{tpu_custom_call.1} parent=1 // pred_check_branch
      %50 = sbr.rel (0) target = $region21
    $region20: #{tpu_custom_call.1} parent=1 // pred_region
      %s52 = ssub.s32 256, 256
      %53 = vsyncadd [#allocation6], %s52
      %s54 = sshll.u32 [#allocation7], 4
      %s55 = int_to_ptr.vmem [resolvable:$true] %s54
      %60 = dma.hbm_to_vmem [thread:$0]  %s4, 256, %s55, [#allocation6], 64, 64, 4
    $region21: #{tpu_custom_call.1} parent=1 // pred_fallthru
      _
    // Predicated region
    $region22: #{tpu_custom_call.1} parent=1 // pred_check
      _
    $region23: #{tpu_custom_call.1} parent=1 // pred_check_branch
      %62 = sbr.rel (0) target = $region25
    $region24: #{tpu_custom_call.1} parent=1 // pred_region
      _
    $region25: #{tpu_custom_call.1} parent=1 // pred_fallthru
      _
    // Predicated region
    $region26: #{tpu_custom_call.1} parent=1 // pred_check
      _
    $region27: #{tpu_custom_call.1} parent=1 // pred_check_branch
      %64 = sbr.rel (0) target = $region29
    $region28: #{tpu_custom_call.1} parent=1 // pred_region
      _
    $region29: #{tpu_custom_call.1} parent=1 // pred_fallthru
      _
    // Predicated region
    $region30: #{tpu_custom_call.1} parent=1 // pred_check
      _
    $region31: #{tpu_custom_call.1} parent=1 // pred_check_branch
      %66 = sbr.rel (0) target = $region33
    $region32: #{tpu_custom_call.1} parent=1 // pred_region
      _
    $region33: #{tpu_custom_call.1} parent=1 // pred_fallthru
      _
    // Predicated region
    $region34: #{tpu_custom_call.1} parent=1 // pred_check
      _
    $region35: #{tpu_custom_call.1} parent=1 // pred_check_branch
      %68 = sbr.rel (0) target = $region37
    $region36: #{tpu_custom_call.1} parent=1 // pred_region
      _
    $region37: #{tpu_custom_call.1} parent=1 // pred_fallthru
      _
    // Predicated region
    $region38: #{tpu_custom_call.1} parent=1 // pred_check
      _
    $region39: #{tpu_custom_call.1} parent=1 // pred_check_branch
      %70 = sbr.rel (0) target = $region41
    $region40: #{tpu_custom_call.1} parent=1 // pred_region
      _
    $region41: #{tpu_custom_call.1} parent=1 // pred_fallthru
      _
    // Predicated region
    $region42: #{tpu_custom_call.1} parent=1 // pred_check
      _
    $region43: #{tpu_custom_call.1} parent=1 // pred_check_branch
      %72 = sbr.rel (0) target = $region45
    $region44: #{tpu_custom_call.1} parent=1 // pred_region
      _
    $region45: #{tpu_custom_call.1} parent=1 // pred_fallthru
      _
    // Predicated region
    $region46: #{tpu_custom_call.1} parent=1 // pred_check
      _
    $region47: #{tpu_custom_call.1} parent=1 // pred_check_branch
      %74 = sbr.rel (0) target = $region49
    $region48: #{tpu_custom_call.1} parent=1 // pred_region
      %s76 = ssub.s32 4096, 4096
      %77 = vsyncadd [#allocation9], %s76
      %s78 = sshll.u32 [#allocation8], 4
      %s79 = int_to_ptr.vmem [resolvable:$true] %s78
      %84 = dma.hbm_to_vmem [thread:$0]  %s11, 4096, %s79, [#allocation9], 256, 256, 16
    $region49: #{tpu_custom_call.1} parent=1 // pred_fallthru
      _
    // Predicated region
    $region50: #{tpu_custom_call.1} parent=1 // pred_check
      _
    $region51: #{tpu_custom_call.1} parent=1 // pred_check_branch
      %86 = sbr.rel (0) target = $region53
    $region52: #{tpu_custom_call.1} parent=1 // pred_region
      %s88 = ssub.s32 4096, 4096
      %89 = vsyncadd [#allocation9], %s88
      %s90 = sshll.u32 [#allocation10], 4
      %s91 = int_to_ptr.vmem [resolvable:$true] %s90
      %96 = dma.hbm_to_vmem [thread:$0]  %s12, 4096, %s91, [#allocation9], 256, 256, 16
    $region53: #{tpu_custom_call.1} parent=1 // pred_fallthru
      _
    // Predicated region
    $region54: #{tpu_custom_call.1} parent=1 // pred_check
      _
    $region55: #{tpu_custom_call.1} parent=1 // pred_check_branch
      %98 = sbr.rel (0) target = $region57
    $region56: #{tpu_custom_call.1} parent=1 // pred_region
      %99 = dma.done [#allocation3], 448
    $region57: #{tpu_custom_call.1} parent=1 // pred_fallthru
      _
    // Predicated region
    $region58: #{tpu_custom_call.1} parent=1 // pred_check
      _
    $region59: #{tpu_custom_call.1} parent=1 // pred_check_branch
      %101 = sbr.rel (0) target = $region61
    $region60: #{tpu_custom_call.1} parent=1 // pred_region
      %102 = dma.done [#allocation6], 512
    $region61: #{tpu_custom_call.1} parent=1 // pred_fallthru
      _
    // Predicated region
    $region62: #{tpu_custom_call.1} parent=1 // pred_check
      _
    $region63: #{tpu_custom_call.1} parent=1 // pred_check_branch
      %104 = sbr.rel (0) target = $region65
    $region64: #{tpu_custom_call.1} parent=1 // pred_region
      %105 = dma.done [#allocation6], 256
    $region65: #{tpu_custom_call.1} parent=1 // pred_fallthru
      _
    // Predicated region
    $region66: #{tpu_custom_call.1} parent=1 // pred_check
      _
    $region67: #{tpu_custom_call.1} parent=1 // pred_check_branch
      %107 = sbr.rel (0) target = $region69
    $region68: #{tpu_custom_call.1} parent=1 // pred_region
      %108 = dma.done [#allocation9], 4096
    $region69: #{tpu_custom_call.1} parent=1 // pred_fallthru
      _
    // Predicated region
    $region70: #{tpu_custom_call.1} parent=1 // pred_check
      _
    $region71: #{tpu_custom_call.1} parent=1 // pred_check_branch
      %110 = sbr.rel (0) target = $region73
    $region72: #{tpu_custom_call.1} parent=1 // pred_region
      %111 = dma.done [#allocation9], 4096
    $region73: #{tpu_custom_call.1} parent=1 // pred_fallthru
      _
    %v113 = vld [vmem:[#allocation2] sm:$0x77]
    %v114 = vld [vmem:[#allocation2 + $0x8] sm:$0x77]
    %v115 = vld [vmem:[#allocation2 + $0x10] sm:$0x77]
    %v116 = vld [vmem:[#allocation2 + $0x18] sm:$0x7]
    %v117 = vld [vmem:[%s7] sm:$0xff]
    %v118 = vld [vmem:[%s7 + $0x8] sm:$0xf]
    %v119 = vld [vmem:[%s8] sm:$0xf]
    %v120 = vld [vmem:[#allocation5] sm:$0xff]
    %v121 = vld [vmem:[#allocation5 + $0x8] sm:$0xff]
    %v122 = vld [vmem:[#allocation5 + $0x10] sm:$0xff]
    %v123 = vld [vmem:[#allocation5 + $0x18] sm:$0xff]
    %v124 = vpack.c.bf16 %v120, %v120
    %v125 = vpack.c.bf16 %v121, %v121
    %v126 = vpack.c.bf16 %v122, %v122
    %v127 = vpack.c.bf16 %v123, %v123
    %v128 = vpack.c.bf16 %v113, %v113
    %v129 = vld [vmem:[%s2] sm:$0xf]
    %v130 = vld [vmem:[%s2 + $0x4] sm:$0xf]
    %v131 = vld [vmem:[%s3] sm:$0xff]
    %v132 = vld [vmem:[%s3 + $0x8] sm:$0xff]
    %134 = vset.pattern.permute.xlu0 0
    %135 = vperm.xlu0 %134, %v131
    %v136 = vpop.permute.xlu0 %135
    %139 = vset.pattern.permute.xlu0 0
    %140 = vperm.xlu0 %139, %v132
    %v141 = vpop.permute.xlu0 %140
    %v145 = vunpack.c.l.b16 %v129
    %v146 = vunpack.c.l.b16 %v130
    %v147 = vpack.c.b16 %v146, %v145
    %vm148 = vcmask 23552
    %v150 = vsel %vm148, %v147, 0
    %vm152 = vcmask 1040384
    %vm153 = vcmask 1041408
    %v154 = vsel %vm152, 4294967295, 65535
    %v155 = vsel %vm153, %v154, 0
    %v157 = vand.u32 %v128, %v155
    %159 = vmatprep.subr.bf16.mxu0 0
    %160 = vmatpush1.bf16.msra.mxu0 %v157
    %161 = vmatprep.subr.bf16.mxu0 0
    %162 = vmatpush1.bf16.msra.mxu0 0
    %163 = vmatprep.subr.bf16.mxu0 0
    %164 = vmatpush1.bf16.msra.mxu0 0
    %165 = vmatprep.subr.bf16.mxu0 0
    %166 = vmatpush1.bf16.msra.mxu0 0
    %167 = vmatprep.subr.bf16.mxu0 0
    %168 = vmatpush1.bf16.msra.mxu0 0
    %169 = vmatprep.subr.bf16.mxu0 0
    %170 = vmatpush1.bf16.msra.mxu0 0
    %171 = vmatprep.subr.bf16.mxu0 0
    %172 = vmatpush1.bf16.msra.mxu0 0
    %173 = vmatprep.subr.bf16.mxu0 0
    %174 = vmatpush1.bf16.msra.mxu0 0
    %175 = vmatprep.subr.bf16.mxu0 0
    %176 = vmatpush1.bf16.msra.mxu0 0
    %177 = vmatprep.subr.bf16.mxu0 0
    %178 = vmatpush1.bf16.msra.mxu0 0
    %179 = vmatprep.subr.bf16.mxu0 0
    %180 = vmatpush1.bf16.msra.mxu0 0
    %181 = vmatprep.subr.bf16.mxu0 0
    %182 = vmatpush1.bf16.msra.mxu0 0
    %183 = vmatprep.subr.bf16.mxu0 0
    %184 = vmatpush1.bf16.msra.mxu0 0
    %185 = vmatprep.subr.bf16.mxu0 0
    %186 = vmatpush1.bf16.msra.mxu0 0
    %187 = vmatprep.subr.bf16.mxu0 0
    %188 = vmatpush1.bf16.msra.mxu0 0
    %189 = vmatprep.subr.bf16.mxu0 0
    %190 = vmatpush1.bf16.msra.mxu0 0
    %191 = vmatprep.mubr.bf16.mxu0 0
    %192 = vmatmul.mubr.bf16.gmra.mrb[0].mxu0 %v150
    %v193 = vpop.f32.mrb[0].mxu0
    %v194 = vadd.f32 %v136, %v193
    %v195 = vpop.f32.mrb[0].mxu0
    %v196 = vpop.f32.mrb[0].mxu0
    %v197 = vadd.f32 %v141, %v196
    %v198 = vpop.f32.mrb[0].mxu0
    %199 = vdwg.mxu0
    %v200 = vmax.f32 %v194, 0.0
    %v201 = vmax.f32 %v197, 0.0
    %v202 = vpack.c.bf16 %v201, %v200
    %v203 = vld [vmem:[#allocation7] sm:$0xf]
    %v204 = vld [vmem:[%s5] sm:$0xff]
    %206 = vset.pattern.permute.xlu0 0
    %207 = vperm.xlu0 %206, %v204
    %v208 = vpop.permute.xlu0 %207
    %vm210 = vcmask 130048
    %v212 = vsel %vm210, %v203, 0
    %214 = vmatprep.subr.bf16.mxu0 0
    %215 = vmatpush1.bf16.msra.mxu0 %v202
    %216 = vmatprep.subr.bf16.mxu0 0
    %217 = vmatpush1.bf16.msra.mxu0 0
    %218 = vmatprep.subr.bf16.mxu0 0
    %219 = vmatpush1.bf16.msra.mxu0 0
    %220 = vmatprep.subr.bf16.mxu0 0
    %221 = vmatpush1.bf16.msra.mxu0 0
    %222 = vmatprep.subr.bf16.mxu0 0
    %223 = vmatpush1.bf16.msra.mxu0 0
    %224 = vmatprep.subr.bf16.mxu0 0
    %225 = vmatpush1.bf16.msra.mxu0 0
    %226 = vmatprep.subr.bf16.mxu0 0
    %227 = vmatpush1.bf16.msra.mxu0 0
    %228 = vmatprep.subr.bf16.mxu0 0
    %229 = vmatpush1.bf16.msra.mxu0 0
    %230 = vmatprep.subr.bf16.mxu0 0
    %231 = vmatpush1.bf16.msra.mxu0 0
    %232 = vmatprep.subr.bf16.mxu0 0
    %233 = vmatpush1.bf16.msra.mxu0 0
    %234 = vmatprep.subr.bf16.mxu0 0
    %235 = vmatpush1.bf16.msra.mxu0 0
    %236 = vmatprep.subr.bf16.mxu0 0
    %237 = vmatpush1.bf16.msra.mxu0 0
    %238 = vmatprep.subr.bf16.mxu0 0
    %239 = vmatpush1.bf16.msra.mxu0 0
    %240 = vmatprep.subr.bf16.mxu0 0
    %241 = vmatpush1.bf16.msra.mxu0 0
    %242 = vmatprep.subr.bf16.mxu0 0
    %243 = vmatpush1.bf16.msra.mxu0 0
    %244 = vmatprep.subr.bf16.mxu0 0
    %245 = vmatpush1.bf16.msra.mxu0 0
    %246 = vmatprep.mubr.bf16.mxu0 0
    %247 = vmatmul.mubr.bf16.gmra.mrb[0].mxu0 %v212
    %v248 = vpop.f32.mrb[0].mxu0
    %v249 = vadd.f32 %v208, %v248
    %v250 = vpop.f32.mrb[0].mxu0
    %v251 = vpop.f32.mrb[0].mxu0
    %v252 = vpop.f32.mrb[0].mxu0
    %253 = vdwg.mxu0
    %v254 = vmax.f32 %v249, 0.0
    %v255 = vpack.c.bf16 %v254, %v254
    %v256 = vld [vmem:[%s6] sm:$0xf]
    %v257 = vld [vmem:[%s6 + $0x4] sm:$0xf]
    %v258 = vld [vmem:[%s6 + $0x8] sm:$0x3]
    %v262 = vunpack.c.l.b16 %v256
    %v263 = vunpack.c.l.b16 %v257
    %v264 = vunpack.c.l.b16 %v258
    %v265 = vpack.c.b16 %v263, %v262
    %v266 = vpack.c.b16 %v264, %v264
    %vm267 = vcmask 64512
    %v269 = vsel %vm267, %v265, 0
    %v272 = vsel %vm267, %v266, 0
    %vm274 = vcmask 1043456
    %v276 = vsel %vm274, %v255, 0
    %278 = vmatprep.subr.bf16.mxu0 0
    %279 = vmatpush1.bf16.msra.mxu0 %v276
    %280 = vmatprep.subr.bf16.mxu0 0
    %281 = vmatpush1.bf16.msra.mxu0 0
    %282 = vmatprep.subr.bf16.mxu0 0
    %283 = vmatpush1.bf16.msra.mxu0 0
    %284 = vmatprep.subr.bf16.mxu0 0
    %285 = vmatpush1.bf16.msra.mxu0 0
    %286 = vmatprep.subr.bf16.mxu0 0
    %287 = vmatpush1.bf16.msra.mxu0 0
    %288 = vmatprep.subr.bf16.mxu0 0
    %289 = vmatpush1.bf16.msra.mxu0 0
    %290 = vmatprep.subr.bf16.mxu0 0
    %291 = vmatpush1.bf16.msra.mxu0 0
    %292 = vmatprep.subr.bf16.mxu0 0
    %293 = vmatpush1.bf16.msra.mxu0 0
    %294 = vmatprep.subr.bf16.mxu0 0
    %295 = vmatpush1.bf16.msra.mxu0 0
    %296 = vmatprep.subr.bf16.mxu0 0
    %297 = vmatpush1.bf16.msra.mxu0 0
    %298 = vmatprep.subr.bf16.mxu0 0
    %299 = vmatpush1.bf16.msra.mxu0 0
    %300 = vmatprep.subr.bf16.mxu0 0
    %301 = vmatpush1.bf16.msra.mxu0 0
    %302 = vmatprep.subr.bf16.mxu0 0
    %303 = vmatpush1.bf16.msra.mxu0 0
    %304 = vmatprep.subr.bf16.mxu0 0
    %305 = vmatpush1.bf16.msra.mxu0 0
    %306 = vmatprep.subr.bf16.mxu0 0
    %307 = vmatpush1.bf16.msra.mxu0 0
    %308 = vmatprep.subr.bf16.mxu0 0
    %309 = vmatpush1.bf16.msra.mxu0 0
    %310 = vmatprep.mubr.bf16.mxu0 0
    %311 = vmatmul.mubr.bf16.gmra.mrb[0].mxu0 %v269
    %v312 = vpop.f32.mrb[0].mxu0
    %v313 = vadd.f32 0.0, %v312
    %v314 = vpop.f32.mrb[0].mxu0
    %v315 = vpop.f32.mrb[0].mxu0
    %v316 = vadd.f32 0.0, %v315
    %v317 = vpop.f32.mrb[0].mxu0
    %318 = vmatprep.mubr.bf16.mxu0 0
    %319 = vmatmul.mubr.bf16.gmra.mrb[0].mxu0 %v272
    %v320 = vpop.f32.mrb[0].mxu0
    %v321 = vadd.f32 0.0, %v320
    %v322 = vpop.f32.mrb[0].mxu0
    %v323 = vpop.f32.mrb[0].mxu0
    %v324 = vpop.f32.mrb[0].mxu0
    %325 = vdwg.mxu0
    %327 = vset.pattern.permute.xlu0 0
    %328 = vperm.xlu0 %327, %v117
    %v329 = vpop.permute.xlu0 %328
    %332 = vset.pattern.permute.xlu0 0
    %333 = vperm.xlu0 %332, %v118
    %v334 = vpop.permute.xlu0 %333
    %v336 = vadd.f32 %v316, %v329
    %v337 = vadd.f32 %v321, %v334
    %338 = vst [vmem:[#allocation11] sm:$0xff] %v336
    %339 = vst [vmem:[#allocation11 + $0x38] sm:$0xf] %v337
    %v340 = vpack.c.bf16 %v313, %v313
    %v341 = vld [vmem:[%s10] sm:$0xff]
    %v342 = vld [vmem:[%s10 + $0x8] sm:$0xff]
    %v343 = vld [vmem:[%s10 + $0x10] sm:$0xff]
    %v344 = vld [vmem:[%s10 + $0x18] sm:$0xff]
    %v345 = vld [vmem:[%s10 + $0x20] sm:$0xff]
    %v346 = vld [vmem:[%s10 + $0x28] sm:$0xff]
    %v347 = vld [vmem:[%s10 + $0x30] sm:$0xff]
    %v348 = vld [vmem:[%s10 + $0x38] sm:$0xff]
    %v349 = vld [vmem:[%s10 + $0x40] sm:$0xff]
    %v350 = vld [vmem:[%s10 + $0x48] sm:$0xff]
    %v351 = vld [vmem:[%s10 + $0x50] sm:$0xff]
    %v352 = vld [vmem:[%s10 + $0x58] sm:$0xff]
    %v353 = vld [vmem:[%s10 + $0x60] sm:$0xff]
    %v354 = vld [vmem:[%s10 + $0x68] sm:$0xff]
    %v355 = vld [vmem:[%s10 + $0x70] sm:$0xff]
    %v356 = vld [vmem:[%s10 + $0x78] sm:$0xff]
    %v357 = vld [vmem:[%s10 + $0x80] sm:$0xff]
    %v358 = vld [vmem:[%s10 + $0x88] sm:$0xff]
    %v359 = vld [vmem:[%s10 + $0x90] sm:$0xff]
    %v360 = vld [vmem:[%s10 + $0x98] sm:$0xff]
    %v361 = vld [vmem:[%s10 + $0xa0] sm:$0xff]
    %v362 = vld [vmem:[%s10 + $0xa8] sm:$0xff]
    %v363 = vld [vmem:[%s10 + $0xb0] sm:$0xff]
    %v364 = vld [vmem:[%s10 + $0xb8] sm:$0xff]
    %v365 = vld [vmem:[%s10 + $0xc0] sm:$0xff]
    %v366 = vld [vmem:[%s10 + $0xc8] sm:$0xff]
    %v367 = vld [vmem:[%s10 + $0xd0] sm:$0xff]
    %v368 = vld [vmem:[%s10 + $0xd8] sm:$0xff]
    %v369 = vld [vmem:[%s10 + $0xe0] sm:$0xff]
    %v370 = vld [vmem:[%s10 + $0xe8] sm:$0xff]
    %v371 = vld [vmem:[%s10 + $0xf0] sm:$0xff]
    %v372 = vld [vmem:[%s10 + $0xf8] sm:$0xff]
    %v405 = vunpack.c.l.b16 %v341
    %v406 = vunpack.c.h.b16 %v341
    %v407 = vunpack.c.l.b16 %v342
    %v408 = vunpack.c.h.b16 %v342
    %v409 = vunpack.c.l.b16 %v343
    %v410 = vunpack.c.h.b16 %v343
    %v411 = vunpack.c.l.b16 %v344
    %v412 = vunpack.c.h.b16 %v344
    %v413 = vunpack.c.l.b16 %v345
    %v414 = vunpack.c.h.b16 %v345
    %v415 = vunpack.c.l.b16 %v346
    %v416 = vunpack.c.h.b16 %v346
    %v417 = vunpack.c.l.b16 %v347
    %v418 = vunpack.c.h.b16 %v347
    %v419 = vunpack.c.l.b16 %v348
    %v420 = vunpack.c.h.b16 %v348
    %v421 = vunpack.c.l.b16 %v349
    %v422 = vunpack.c.h.b16 %v349
    %v423 = vunpack.c.l.b16 %v350
    %v424 = vunpack.c.h.b16 %v350
    %v425 = vunpack.c.l.b16 %v351
    %v426 = vunpack.c.h.b16 %v351
    %v427 = vunpack.c.l.b16 %v352
    %v428 = vunpack.c.h.b16 %v352
    %v429 = vunpack.c.l.b16 %v353
    %v430 = vunpack.c.h.b16 %v353
    %v431 = vunpack.c.l.b16 %v354
    %v432 = vunpack.c.h.b16 %v354
    %v433 = vunpack.c.l.b16 %v355
    %v434 = vunpack.c.h.b16 %v355
    %v435 = vunpack.c.l.b16 %v356
    %v436 = vunpack.c.h.b16 %v356
    %v437 = vunpack.c.l.b16 %v357
    %v438 = vunpack.c.h.b16 %v357
    %v439 = vunpack.c.l.b16 %v358
    %v440 = vunpack.c.h.b16 %v358
    %v441 = vunpack.c.l.b16 %v359
    %v442 = vunpack.c.h.b16 %v359
    %v443 = vunpack.c.l.b16 %v360
    %v444 = vunpack.c.h.b16 %v360
    %v445 = vunpack.c.l.b16 %v361
    %v446 = vunpack.c.h.b16 %v361
    %v447 = vunpack.c.l.b16 %v362
    %v448 = vunpack.c.h.b16 %v362
    %v449 = vunpack.c.l.b16 %v363
    %v450 = vunpack.c.h.b16 %v363
    %v451 = vunpack.c.l.b16 %v364
    %v452 = vunpack.c.h.b16 %v364
    %v453 = vunpack.c.l.b16 %v365
    %v454 = vunpack.c.h.b16 %v365
    %v455 = vunpack.c.l.b16 %v366
    %v456 = vunpack.c.h.b16 %v366
    %v457 = vunpack.c.l.b16 %v367
    %v458 = vunpack.c.h.b16 %v367
    %v459 = vunpack.c.l.b16 %v368
    %v460 = vunpack.c.h.b16 %v368
    %v461 = vunpack.c.l.b16 %v369
    %v462 = vunpack.c.h.b16 %v369
    %v463 = vunpack.c.l.b16 %v370
    %v464 = vunpack.c.h.b16 %v370
    %v465 = vunpack.c.l.b16 %v371
    %v466 = vunpack.c.h.b16 %v371
    %v467 = vunpack.c.l.b16 %v372
    %v468 = vunpack.c.h.b16 %v372
    %v469 = vpack.c.b16 %v409, %v405
    %v470 = vpack.c.b16 %v410, %v406
    %v471 = vpack.c.b16 %v411, %v407
    %v472 = vpack.c.b16 %v412, %v408
    %v473 = vpack.c.b16 %v417, %v413
    %v474 = vpack.c.b16 %v418, %v414
    %v475 = vpack.c.b16 %v419, %v415
    %v476 = vpack.c.b16 %v420, %v416
    %v477 = vpack.c.b16 %v425, %v421
    %v478 = vpack.c.b16 %v426, %v422
    %v479 = vpack.c.b16 %v427, %v423
    %v480 = vpack.c.b16 %v428, %v424
    %v481 = vpack.c.b16 %v433, %v429
    %v482 = vpack.c.b16 %v434, %v430
    %v483 = vpack.c.b16 %v435, %v431
    %v484 = vpack.c.b16 %v436, %v432
    %v485 = vpack.c.b16 %v441, %v437
    %v486 = vpack.c.b16 %v442, %v438
    %v487 = vpack.c.b16 %v443, %v439
    %v488 = vpack.c.b16 %v444, %v440
    %v489 = vpack.c.b16 %v449, %v445
    %v490 = vpack.c.b16 %v450, %v446
    %v491 = vpack.c.b16 %v451, %v447
    %v492 = vpack.c.b16 %v452, %v448
    %v493 = vpack.c.b16 %v457, %v453
    %v494 = vpack.c.b16 %v458, %v454
    %v495 = vpack.c.b16 %v459, %v455
    %v496 = vpack.c.b16 %v460, %v456
    %v497 = vpack.c.b16 %v465, %v461
    %v498 = vpack.c.b16 %v466, %v462
    %v499 = vpack.c.b16 %v467, %v463
    %v500 = vpack.c.b16 %v468, %v464
    %533 = vmatprep.subr.bf16.mxu0 %v470
    %534 = vmatpush1.bf16.msra.mxu0 %v469
    %535 = vmatprep.subr.bf16.mxu0 %v474
    %536 = vmatpush1.bf16.msra.mxu0 %v473
    %537 = vmatprep.subr.bf16.mxu0 %v478
    %538 = vmatpush1.bf16.msra.mxu0 %v477
    %539 = vmatprep.subr.bf16.mxu0 %v482
    %540 = vmatpush1.bf16.msra.mxu0 %v481
    %541 = vmatprep.subr.bf16.mxu0 %v486
    %542 = vmatpush1.bf16.msra.mxu0 %v485
    %543 = vmatprep.subr.bf16.mxu0 %v490
    %544 = vmatpush1.bf16.msra.mxu0 %v489
    %545 = vmatprep.subr.bf16.mxu0 %v494
    %546 = vmatpush1.bf16.msra.mxu0 %v493
    %547 = vmatprep.subr.bf16.mxu0 %v498
    %548 = vmatpush1.bf16.msra.mxu0 %v497
    %549 = vmatprep.subr.bf16.mxu0 0
    %550 = vmatpush1.bf16.msra.mxu0 0
    %551 = vmatprep.subr.bf16.mxu0 0
    %552 = vmatpush1.bf16.msra.mxu0 0
    %553 = vmatprep.subr.bf16.mxu0 0
    %554 = vmatpush1.bf16.msra.mxu0 0
    %555 = vmatprep.subr.bf16.mxu0 0
    %556 = vmatpush1.bf16.msra.mxu0 0
    %557 = vmatprep.subr.bf16.mxu0 0
    %558 = vmatpush1.bf16.msra.mxu0 0
    %559 = vmatprep.subr.bf16.mxu0 0
    %560 = vmatpush1.bf16.msra.mxu0 0
    %561 = vmatprep.subr.bf16.mxu0 0
    %562 = vmatpush1.bf16.msra.mxu0 0
    %563 = vmatprep.subr.bf16.mxu0 0
    %564 = vmatpush1.bf16.msra.mxu0 0
    %565 = vmatprep.mubr.bf16.mxu0 0
    %566 = vmatmul.mubr.bf16.gmra.mrb[0].mxu0 %v340
    %v567 = vpop.f32.mrb[0].mxu0
    %v568 = vadd.f32 0.0, %v567
    %v569 = vpop.f32.mrb[0].mxu0
    %v570 = vadd.f32 0.0, %v569
    %v571 = vpop.f32.mrb[0].mxu0
    %v572 = vpop.f32.mrb[0].mxu0
    %573 = vdwg.mxu0
    %574 = vmatprep.subr.bf16.mxu0 %v472
    %575 = vmatpush1.bf16.msra.mxu0 %v471
    %576 = vmatprep.subr.bf16.mxu0 %v476
    %577 = vmatpush1.bf16.msra.mxu0 %v475
    %578 = vmatprep.subr.bf16.mxu0 %v480
    %579 = vmatpush1.bf16.msra.mxu0 %v479
    %580 = vmatprep.subr.bf16.mxu0 %v484
    %581 = vmatpush1.bf16.msra.mxu0 %v483
    %582 = vmatprep.subr.bf16.mxu0 %v488
    %583 = vmatpush1.bf16.msra.mxu0 %v487
    %584 = vmatprep.subr.bf16.mxu0 %v492
    %585 = vmatpush1.bf16.msra.mxu0 %v491
    %586 = vmatprep.subr.bf16.mxu0 %v496
    %587 = vmatpush1.bf16.msra.mxu0 %v495
    %588 = vmatprep.subr.bf16.mxu0 %v500
    %589 = vmatpush1.bf16.msra.mxu0 %v499
    %590 = vmatprep.subr.bf16.mxu0 0
    %591 = vmatpush1.bf16.msra.mxu0 0
    %592 = vmatprep.subr.bf16.mxu0 0
    %593 = vmatpush1.bf16.msra.mxu0 0
    %594 = vmatprep.subr.bf16.mxu0 0
    %595 = vmatpush1.bf16.msra.mxu0 0
    %596 = vmatprep.subr.bf16.mxu0 0
    %597 = vmatpush1.bf16.msra.mxu0 0
    %598 = vmatprep.subr.bf16.mxu0 0
    %599 = vmatpush1.bf16.msra.mxu0 0
    %600 = vmatprep.subr.bf16.mxu0 0
    %601 = vmatpush1.bf16.msra.mxu0 0
    %602 = vmatprep.subr.bf16.mxu0 0
    %603 = vmatpush1.bf16.msra.mxu0 0
    %604 = vmatprep.subr.bf16.mxu0 0
    %605 = vmatpush1.bf16.msra.mxu0 0
    %606 = vmatprep.mubr.bf16.mxu0 0
    %607 = vmatmul.mubr.bf16.gmra.mrb[0].mxu0 %v340
    %v608 = vpop.f32.mrb[0].mxu0
    %v609 = vadd.f32 0.0, %v608
    %v610 = vpop.f32.mrb[0].mxu0
    %v611 = vadd.f32 0.0, %v610
    %v612 = vpop.f32.mrb[0].mxu0
    %v613 = vpop.f32.mrb[0].mxu0
    %614 = vdwg.mxu0
    %v616 = vsel %vm267, %v119, 0
    %v619 = vsel %vm274, %v124, 0
    %v622 = vsel %vm274, %v125, 0
    %v625 = vsel %vm274, %v126, 0
    %v628 = vsel %vm274, %v127, 0
    %630 = vmatprep.subr.bf16.mxu0 %v622
    %631 = vmatpush1.bf16.msra.mxu0 %v619
    %632 = vmatprep.subr.bf16.mxu0 0
    %633 = vmatpush1.bf16.msra.mxu0 0
    %634 = vmatprep.subr.bf16.mxu0 0
    %635 = vmatpush1.bf16.msra.mxu0 0
    %636 = vmatprep.subr.bf16.mxu0 0
    %637 = vmatpush1.bf16.msra.mxu0 0
    %638 = vmatprep.subr.bf16.mxu0 0
    %639 = vmatpush1.bf16.msra.mxu0 0
    %640 = vmatprep.subr.bf16.mxu0 0
    %641 = vmatpush1.bf16.msra.mxu0 0
    %642 = vmatprep.subr.bf16.mxu0 0
    %643 = vmatpush1.bf16.msra.mxu0 0
    %644 = vmatprep.subr.bf16.mxu0 0
    %645 = vmatpush1.bf16.msra.mxu0 0
    %646 = vmatprep.subr.bf16.mxu0 0
    %647 = vmatpush1.bf16.msra.mxu0 0
    %648 = vmatprep.subr.bf16.mxu0 0
    %649 = vmatpush1.bf16.msra.mxu0 0
    %650 = vmatprep.subr.bf16.mxu0 0
    %651 = vmatpush1.bf16.msra.mxu0 0
    %652 = vmatprep.subr.bf16.mxu0 0
    %653 = vmatpush1.bf16.msra.mxu0 0
    %654 = vmatprep.subr.bf16.mxu0 0
    %655 = vmatpush1.bf16.msra.mxu0 0
    %656 = vmatprep.subr.bf16.mxu0 0
    %657 = vmatpush1.bf16.msra.mxu0 0
    %658 = vmatprep.subr.bf16.mxu0 0
    %659 = vmatpush1.bf16.msra.mxu0 0
    %660 = vmatprep.subr.bf16.mxu0 0
    %661 = vmatpush1.bf16.msra.mxu0 0
    %662 = vmatprep.mubr.bf16.mxu0 0
    %663 = vmatmul.mubr.bf16.gmra.mrb[0].mxu0 %v616
    %v664 = vpop.f32.mrb[0].mxu0
    %v665 = vadd.f32 %v568, %v664
    %v666 = vpop.f32.mrb[0].mxu0
    %v667 = vadd.f32 %v570, %v666
    %v668 = vpop.f32.mrb[0].mxu0
    %v669 = vpop.f32.mrb[0].mxu0
    %670 = vdwg.mxu0
    %671 = vmatprep.subr.bf16.mxu0 %v628
    %672 = vmatpush1.bf16.msra.mxu0 %v625
    %673 = vmatprep.subr.bf16.mxu0 0
    %674 = vmatpush1.bf16.msra.mxu0 0
    %675 = vmatprep.subr.bf16.mxu0 0
    %676 = vmatpush1.bf16.msra.mxu0 0
    %677 = vmatprep.subr.bf16.mxu0 0
    %678 = vmatpush1.bf16.msra.mxu0 0
    %679 = vmatprep.subr.bf16.mxu0 0
    %680 = vmatpush1.bf16.msra.mxu0 0
    %681 = vmatprep.subr.bf16.mxu0 0
    %682 = vmatpush1.bf16.msra.mxu0 0
    %683 = vmatprep.subr.bf16.mxu0 0
    %684 = vmatpush1.bf16.msra.mxu0 0
    %685 = vmatprep.subr.bf16.mxu0 0
    %686 = vmatpush1.bf16.msra.mxu0 0
    %687 = vmatprep.subr.bf16.mxu0 0
    %688 = vmatpush1.bf16.msra.mxu0 0
    %689 = vmatprep.subr.bf16.mxu0 0
    %690 = vmatpush1.bf16.msra.mxu0 0
    %691 = vmatprep.subr.bf16.mxu0 0
    %692 = vmatpush1.bf16.msra.mxu0 0
    %693 = vmatprep.subr.bf16.mxu0 0
    %694 = vmatpush1.bf16.msra.mxu0 0
    %695 = vmatprep.subr.bf16.mxu0 0
    %696 = vmatpush1.bf16.msra.mxu0 0
    %697 = vmatprep.subr.bf16.mxu0 0
    %698 = vmatpush1.bf16.msra.mxu0 0
    %699 = vmatprep.subr.bf16.mxu0 0
    %700 = vmatpush1.bf16.msra.mxu0 0
    %701 = vmatprep.subr.bf16.mxu0 0
    %702 = vmatpush1.bf16.msra.mxu0 0
    %703 = vmatprep.mubr.bf16.mxu0 0
    %704 = vmatmul.mubr.bf16.gmra.mrb[0].mxu0 %v616
    %v705 = vpop.f32.mrb[0].mxu0
    %v706 = vadd.f32 %v609, %v705
    %v707 = vpop.f32.mrb[0].mxu0
    %v708 = vadd.f32 %v611, %v707
    %v709 = vpop.f32.mrb[0].mxu0
    %v710 = vpop.f32.mrb[0].mxu0
    %711 = vdwg.mxu0
    %v713 = vcombine.high %v113, %v113
    %v715 = vpack.c.bf16 %v713, %v713
    %s716 = scalar_lea.vmem %s2, 8
    %v717 = vld [vmem:[%s716] sm:$0xf]
    %v718 = vld [vmem:[%s716 + $0x4] sm:$0xf]
    %s719 = scalar_lea.vmem %s3, 16
    %v720 = vld [vmem:[%s719] sm:$0xff]
    %v721 = vld [vmem:[%s719 + $0x8] sm:$0xff]
    %723 = vset.pattern.permute.xlu0 0
    %724 = vperm.xlu0 %723, %v720
    %v725 = vpop.permute.xlu0 %724
    %728 = vset.pattern.permute.xlu0 0
    %729 = vperm.xlu0 %728, %v721
    %v730 = vpop.permute.xlu0 %729
    %v734 = vunpack.c.l.b16 %v717
    %v735 = vunpack.c.l.b16 %v718
    %v736 = vpack.c.b16 %v735, %v734
    %v738 = vsel %vm148, %v736, 0
    %v741 = vand.u32 %v715, %v155
    %743 = vmatprep.subr.bf16.mxu0 0
    %744 = vmatpush1.bf16.msra.mxu0 %v741
    %745 = vmatprep.subr.bf16.mxu0 0
    %746 = vmatpush1.bf16.msra.mxu0 0
    %747 = vmatprep.subr.bf16.mxu0 0
    %748 = vmatpush1.bf16.msra.mxu0 0
    %749 = vmatprep.subr.bf16.mxu0 0
    %750 = vmatpush1.bf16.msra.mxu0 0
    %751 = vmatprep.subr.bf16.mxu0 0
    %752 = vmatpush1.bf16.msra.mxu0 0
    %753 = vmatprep.subr.bf16.mxu0 0
    %754 = vmatpush1.bf16.msra.mxu0 0
    %755 = vmatprep.subr.bf16.mxu0 0
    %756 = vmatpush1.bf16.msra.mxu0 0
    %757 = vmatprep.subr.bf16.mxu0 0
    %758 = vmatpush1.bf16.msra.mxu0 0
    %759 = vmatprep.subr.bf16.mxu0 0
    %760 = vmatpush1.bf16.msra.mxu0 0
    %761 = vmatprep.subr.bf16.mxu0 0
    %762 = vmatpush1.bf16.msra.mxu0 0
    %763 = vmatprep.subr.bf16.mxu0 0
    %764 = vmatpush1.bf16.msra.mxu0 0
    %765 = vmatprep.subr.bf16.mxu0 0
    %766 = vmatpush1.bf16.msra.mxu0 0
    %767 = vmatprep.subr.bf16.mxu0 0
    %768 = vmatpush1.bf16.msra.mxu0 0
    %769 = vmatprep.subr.bf16.mxu0 0
    %770 = vmatpush1.bf16.msra.mxu0 0
    %771 = vmatprep.subr.bf16.mxu0 0
    %772 = vmatpush1.bf16.msra.mxu0 0
    %773 = vmatprep.subr.bf16.mxu0 0
    %774 = vmatpush1.bf16.msra.mxu0 0
    %775 = vmatprep.mubr.bf16.mxu0 0
    %776 = vmatmul.mubr.bf16.gmra.mrb[0].mxu0 %v738
    %v777 = vpop.f32.mrb[0].mxu0
    %v778 = vadd.f32 %v725, %v777
    %v779 = vpop.f32.mrb[0].mxu0
    %v780 = vpop.f32.mrb[0].mxu0
    %v781 = vadd.f32 %v730, %v780
    %v782 = vpop.f32.mrb[0].mxu0
    %783 = vdwg.mxu0
    %v784 = vmax.f32 %v778, 0.0
    %v785 = vmax.f32 %v781, 0.0
    %v786 = vpack.c.bf16 %v785, %v784
    %s787 = scalar_lea.vmem [#allocation7], 4
    %v788 = vld [vmem:[%s787] sm:$0xf]
    %s789 = scalar_lea.vmem %s5, 8
    %v790 = vld [vmem:[%s789] sm:$0xff]
    %792 = vset.pattern.permute.xlu0 0
    %793 = vperm.xlu0 %792, %v790
    %v794 = vpop.permute.xlu0 %793
    %v797 = vsel %vm210, %v788, 0
    %799 = vmatprep.subr.bf16.mxu0 0
    %800 = vmatpush1.bf16.msra.mxu0 %v786
    %801 = vmatprep.subr.bf16.mxu0 0
    %802 = vmatpush1.bf16.msra.mxu0 0
    %803 = vmatprep.subr.bf16.mxu0 0
    %804 = vmatpush1.bf16.msra.mxu0 0
    %805 = vmatprep.subr.bf16.mxu0 0
    %806 = vmatpush1.bf16.msra.mxu0 0
    %807 = vmatprep.subr.bf16.mxu0 0
    %808 = vmatpush1.bf16.msra.mxu0 0
    %809 = vmatprep.subr.bf16.mxu0 0
    %810 = vmatpush1.bf16.msra.mxu0 0
    %811 = vmatprep.subr.bf16.mxu0 0
    %812 = vmatpush1.bf16.msra.mxu0 0
    %813 = vmatprep.subr.bf16.mxu0 0
    %814 = vmatpush1.bf16.msra.mxu0 0
    %815 = vmatprep.subr.bf16.mxu0 0
    %816 = vmatpush1.bf16.msra.mxu0 0
    %817 = vmatprep.subr.bf16.mxu0 0
    %818 = vmatpush1.bf16.msra.mxu0 0
    %819 = vmatprep.subr.bf16.mxu0 0
    %820 = vmatpush1.bf16.msra.mxu0 0
    %821 = vmatprep.subr.bf16.mxu0 0
    %822 = vmatpush1.bf16.msra.mxu0 0
    %823 = vmatprep.subr.bf16.mxu0 0
    %824 = vmatpush1.bf16.msra.mxu0 0
    %825 = vmatprep.subr.bf16.mxu0 0
    %826 = vmatpush1.bf16.msra.mxu0 0
    %827 = vmatprep.subr.bf16.mxu0 0
    %828 = vmatpush1.bf16.msra.mxu0 0
    %829 = vmatprep.subr.bf16.mxu0 0
    %830 = vmatpush1.bf16.msra.mxu0 0
    %831 = vmatprep.mubr.bf16.mxu0 0
    %832 = vmatmul.mubr.bf16.gmra.mrb[0].mxu0 %v797
    %v833 = vpop.f32.mrb[0].mxu0
    %v834 = vadd.f32 %v794, %v833
    %v835 = vpop.f32.mrb[0].mxu0
    %v836 = vpop.f32.mrb[0].mxu0
    %v837 = vpop.f32.mrb[0].mxu0
    %838 = vdwg.mxu0
    %v839 = vmax.f32 %v834, 0.0
    %v840 = vpack.c.bf16 %v839, %v839
    %s841 = scalar_lea.vmem %s6, 12
    %v842 = vld [vmem:[%s841] sm:$0xf]
    %v843 = vld [vmem:[%s841 + $0x4] sm:$0xf]
    %v844 = vld [vmem:[%s841 + $0x8] sm:$0x3]
    %v848 = vunpack.c.l.b16 %v842
    %v849 = vunpack.c.l.b16 %v843
    %v850 = vunpack.c.l.b16 %v844
    %v851 = vpack.c.b16 %v849, %v848
    %v852 = vpack.c.b16 %v850, %v850
    %v854 = vsel %vm267, %v851, 0
    %v857 = vsel %vm267, %v852, 0
    %v860 = vsel %vm274, %v840, 0
    %862 = vmatprep.subr.bf16.mxu0 0
    %863 = vmatpush1.bf16.msra.mxu0 %v860
    %864 = vmatprep.subr.bf16.mxu0 0
    %865 = vmatpush1.bf16.msra.mxu0 0
    %866 = vmatprep.subr.bf16.mxu0 0
    %867 = vmatpush1.bf16.msra.mxu0 0
    %868 = vmatprep.subr.bf16.mxu0 0
    %869 = vmatpush1.bf16.msra.mxu0 0
    %870 = vmatprep.subr.bf16.mxu0 0
    %871 = vmatpush1.bf16.msra.mxu0 0
    %872 = vmatprep.subr.bf16.mxu0 0
    %873 = vmatpush1.bf16.msra.mxu0 0
    %874 = vmatprep.subr.bf16.mxu0 0
    %875 = vmatpush1.bf16.msra.mxu0 0
    %876 = vmatprep.subr.bf16.mxu0 0
    %877 = vmatpush1.bf16.msra.mxu0 0
    %878 = vmatprep.subr.bf16.mxu0 0
    %879 = vmatpush1.bf16.msra.mxu0 0
    %880 = vmatprep.subr.bf16.mxu0 0
    %881 = vmatpush1.bf16.msra.mxu0 0
    %882 = vmatprep.subr.bf16.mxu0 0
    %883 = vmatpush1.bf16.msra.mxu0 0
    %884 = vmatprep.subr.bf16.mxu0 0
    %885 = vmatpush1.bf16.msra.mxu0 0
    %886 = vmatprep.subr.bf16.mxu0 0
    %887 = vmatpush1.bf16.msra.mxu0 0
    %888 = vmatprep.subr.bf16.mxu0 0
    %889 = vmatpush1.bf16.msra.mxu0 0
    %890 = vmatprep.subr.bf16.mxu0 0
    %891 = vmatpush1.bf16.msra.mxu0 0
    %892 = vmatprep.subr.bf16.mxu0 0
    %893 = vmatpush1.bf16.msra.mxu0 0
    %894 = vmatprep.mubr.bf16.mxu0 0
    %895 = vmatmul.mubr.bf16.gmra.mrb[0].mxu0 %v854
    %v896 = vpop.f32.mrb[0].mxu0
    %v897 = vadd.f32 0.0, %v896
    %v898 = vpop.f32.mrb[0].mxu0
    %v899 = vpop.f32.mrb[0].mxu0
    %v900 = vadd.f32 0.0, %v899
    %v901 = vpop.f32.mrb[0].mxu0
    %902 = vmatprep.mubr.bf16.mxu0 0
    %903 = vmatmul.mubr.bf16.gmra.mrb[0].mxu0 %v857
    %v904 = vpop.f32.mrb[0].mxu0
    %v905 = vadd.f32 0.0, %v904
    %v906 = vpop.f32.mrb[0].mxu0
    %v907 = vpop.f32.mrb[0].mxu0
    %v908 = vpop.f32.mrb[0].mxu0
    %909 = vdwg.mxu0
    %v910 = vadd.f32 %v900, %v329
    %v911 = vadd.f32 %v905, %v334
    %912 = vst [vmem:[#allocation11 + $0x8] sm:$0xff] %v910
    %913 = vst [vmem:[#allocation11 + $0x40] sm:$0xf] %v911
    %v914 = vpack.c.bf16 %v897, %v897
    %v915 = vld [vmem:[#allocation8] sm:$0xff]
    %v916 = vld [vmem:[#allocation8 + $0x8] sm:$0xff]
    %v917 = vld [vmem:[#allocation8 + $0x10] sm:$0xff]
    %v918 = vld [vmem:[#allocation8 + $0x18] sm:$0xff]
    %v919 = vld [vmem:[#allocation8 + $0x20] sm:$0xff]
    %v920 = vld [vmem:[#allocation8 + $0x28] sm:$0xff]
    %v921 = vld [vmem:[#allocation8 + $0x30] sm:$0xff]
    %v922 = vld [vmem:[#allocation8 + $0x38] sm:$0xff]
    %v923 = vld [vmem:[#allocation8 + $0x40] sm:$0xff]
    %v924 = vld [vmem:[#allocation8 + $0x48] sm:$0xff]
    %v925 = vld [vmem:[#allocation8 + $0x50] sm:$0xff]
    %v926 = vld [vmem:[#allocation8 + $0x58] sm:$0xff]
    %v927 = vld [vmem:[#allocation8 + $0x60] sm:$0xff]
    %v928 = vld [vmem:[#allocation8 + $0x68] sm:$0xff]
    %v929 = vld [vmem:[#allocation8 + $0x70] sm:$0xff]
    %v930 = vld [vmem:[#allocation8 + $0x78] sm:$0xff]
    %v931 = vld [vmem:[#allocation8 + $0x80] sm:$0xff]
    %v932 = vld [vmem:[#allocation8 + $0x88] sm:$0xff]
    %v933 = vld [vmem:[#allocation8 + $0x90] sm:$0xff]
    %v934 = vld [vmem:[#allocation8 + $0x98] sm:$0xff]
    %v935 = vld [vmem:[#allocation8 + $0xa0] sm:$0xff]
    %v936 = vld [vmem:[#allocation8 + $0xa8] sm:$0xff]
    %v937 = vld [vmem:[#allocation8 + $0xb0] sm:$0xff]
    %v938 = vld [vmem:[#allocation8 + $0xb8] sm:$0xff]
    %v939 = vld [vmem:[#allocation8 + $0xc0] sm:$0xff]
    %v940 = vld [vmem:[#allocation8 + $0xc8] sm:$0xff]
    %v941 = vld [vmem:[#allocation8 + $0xd0] sm:$0xff]
    %v942 = vld [vmem:[#allocation8 + $0xd8] sm:$0xff]
    %v943 = vld [vmem:[#allocation8 + $0xe0] sm:$0xff]
    %v944 = vld [vmem:[#allocation8 + $0xe8] sm:$0xff]
    %v945 = vld [vmem:[#allocation8 + $0xf0] sm:$0xff]
    %v946 = vld [vmem:[#allocation8 + $0xf8] sm:$0xff]
    %v979 = vunpack.c.l.b16 %v915
    %v980 = vunpack.c.h.b16 %v915
    %v981 = vunpack.c.l.b16 %v916
    %v982 = vunpack.c.h.b16 %v916
    %v983 = vunpack.c.l.b16 %v917
    %v984 = vunpack.c.h.b16 %v917
    %v985 = vunpack.c.l.b16 %v918
    %v986 = vunpack.c.h.b16 %v918
    %v987 = vunpack.c.l.b16 %v919
    %v988 = vunpack.c.h.b16 %v919
    %v989 = vunpack.c.l.b16 %v920
    %v990 = vunpack.c.h.b16 %v920
    %v991 = vunpack.c.l.b16 %v921
    %v992 = vunpack.c.h.b16 %v921
    %v993 = vunpack.c.l.b16 %v922
    %v994 = vunpack.c.h.b16 %v922
    %v995 = vunpack.c.l.b16 %v923
    %v996 = vunpack.c.h.b16 %v923
    %v997 = vunpack.c.l.b16 %v924
    %v998 = vunpack.c.h.b16 %v924
    %v999 = vunpack.c.l.b16 %v925
    %v1000 = vunpack.c.h.b16 %v925
    %v1001 = vunpack.c.l.b16 %v926
    %v1002 = vunpack.c.h.b16 %v926
    %v1003 = vunpack.c.l.b16 %v927
    %v1004 = vunpack.c.h.b16 %v927
    %v1005 = vunpack.c.l.b16 %v928
    %v1006 = vunpack.c.h.b16 %v928
    %v1007 = vunpack.c.l.b16 %v929
    %v1008 = vunpack.c.h.b16 %v929
    %v1009 = vunpack.c.l.b16 %v930
    %v1010 = vunpack.c.h.b16 %v930
    %v1011 = vunpack.c.l.b16 %v931
    %v1012 = vunpack.c.h.b16 %v931
    %v1013 = vunpack.c.l.b16 %v932
    %v1014 = vunpack.c.h.b16 %v932
    %v1015 = vunpack.c.l.b16 %v933
    %v1016 = vunpack.c.h.b16 %v933
    %v1017 = vunpack.c.l.b16 %v934
    %v1018 = vunpack.c.h.b16 %v934
    %v1019 = vunpack.c.l.b16 %v935
    %v1020 = vunpack.c.h.b16 %v935
    %v1021 = vunpack.c.l.b16 %v936
    %v1022 = vunpack.c.h.b16 %v936
    %v1023 = vunpack.c.l.b16 %v937
    %v1024 = vunpack.c.h.b16 %v937
    %v1025 = vunpack.c.l.b16 %v938
    %v1026 = vunpack.c.h.b16 %v938
    %v1027 = vunpack.c.l.b16 %v939
    %v1028 = vunpack.c.h.b16 %v939
    %v1029 = vunpack.c.l.b16 %v940
    %v1030 = vunpack.c.h.b16 %v940
    %v1031 = vunpack.c.l.b16 %v941
    %v1032 = vunpack.c.h.b16 %v941
    %v1033 = vunpack.c.l.b16 %v942
    %v1034 = vunpack.c.h.b16 %v942
    %v1035 = vunpack.c.l.b16 %v943
    %v1036 = vunpack.c.h.b16 %v943
    %v1037 = vunpack.c.l.b16 %v944
    %v1038 = vunpack.c.h.b16 %v944
    %v1039 = vunpack.c.l.b16 %v945
    %v1040 = vunpack.c.h.b16 %v945
    %v1041 = vunpack.c.l.b16 %v946
    %v1042 = vunpack.c.h.b16 %v946
    %v1043 = vpack.c.b16 %v983, %v979
    %v1044 = vpack.c.b16 %v984, %v980
    %v1045 = vpack.c.b16 %v985, %v981
    %v1046 = vpack.c.b16 %v986, %v982
    %v1047 = vpack.c.b16 %v991, %v987
    %v1048 = vpack.c.b16 %v992, %v988
    %v1049 = vpack.c.b16 %v993, %v989
    %v1050 = vpack.c.b16 %v994, %v990
    %v1051 = vpack.c.b16 %v999, %v995
    %v1052 = vpack.c.b16 %v1000, %v996
    %v1053 = vpack.c.b16 %v1001, %v997
    %v1054 = vpack.c.b16 %v1002, %v998
    %v1055 = vpack.c.b16 %v1007, %v1003
    %v1056 = vpack.c.b16 %v1008, %v1004
    %v1057 = vpack.c.b16 %v1009, %v1005
    %v1058 = vpack.c.b16 %v1010, %v1006
    %v1059 = vpack.c.b16 %v1015, %v1011
    %v1060 = vpack.c.b16 %v1016, %v1012
    %v1061 = vpack.c.b16 %v1017, %v1013
    %v1062 = vpack.c.b16 %v1018, %v1014
    %v1063 = vpack.c.b16 %v1023, %v1019
    %v1064 = vpack.c.b16 %v1024, %v1020
    %v1065 = vpack.c.b16 %v1025, %v1021
    %v1066 = vpack.c.b16 %v1026, %v1022
    %v1067 = vpack.c.b16 %v1031, %v1027
    %v1068 = vpack.c.b16 %v1032, %v1028
    %v1069 = vpack.c.b16 %v1033, %v1029
    %v1070 = vpack.c.b16 %v1034, %v1030
    %v1071 = vpack.c.b16 %v1039, %v1035
    %v1072 = vpack.c.b16 %v1040, %v1036
    %v1073 = vpack.c.b16 %v1041, %v1037
    %v1074 = vpack.c.b16 %v1042, %v1038
    %1107 = vmatprep.subr.bf16.mxu0 %v1044
    %1108 = vmatpush1.bf16.msra.mxu0 %v1043
    %1109 = vmatprep.subr.bf16.mxu0 %v1048
    %1110 = vmatpush1.bf16.msra.mxu0 %v1047
    %1111 = vmatprep.subr.bf16.mxu0 %v1052
    %1112 = vmatpush1.bf16.msra.mxu0 %v1051
    %1113 = vmatprep.subr.bf16.mxu0 %v1056
    %1114 = vmatpush1.bf16.msra.mxu0 %v1055
    %1115 = vmatprep.subr.bf16.mxu0 %v1060
    %1116 = vmatpush1.bf16.msra.mxu0 %v1059
    %1117 = vmatprep.subr.bf16.mxu0 %v1064
    %1118 = vmatpush1.bf16.msra.mxu0 %v1063
    %1119 = vmatprep.subr.bf16.mxu0 %v1068
    %1120 = vmatpush1.bf16.msra.mxu0 %v1067
    %1121 = vmatprep.subr.bf16.mxu0 %v1072
    %1122 = vmatpush1.bf16.msra.mxu0 %v1071
    %1123 = vmatprep.subr.bf16.mxu0 0
    %1124 = vmatpush1.bf16.msra.mxu0 0
    %1125 = vmatprep.subr.bf16.mxu0 0
    %1126 = vmatpush1.bf16.msra.mxu0 0
    %1127 = vmatprep.subr.bf16.mxu0 0
    %1128 = vmatpush1.bf16.msra.mxu0 0
    %1129 = vmatprep.subr.bf16.mxu0 0
    %1130 = vmatpush1.bf16.msra.mxu0 0
    %1131 = vmatprep.subr.bf16.mxu0 0
    %1132 = vmatpush1.bf16.msra.mxu0 0
    %1133 = vmatprep.subr.bf16.mxu0 0
    %1134 = vmatpush1.bf16.msra.mxu0 0
    %1135 = vmatprep.subr.bf16.mxu0 0
    %1136 = vmatpush1.bf16.msra.mxu0 0
    %1137 = vmatprep.subr.bf16.mxu0 0
    %1138 = vmatpush1.bf16.msra.mxu0 0
    %1139 = vmatprep.mubr.bf16.mxu0 0
    %1140 = vmatmul.mubr.bf16.gmra.mrb[0].mxu0 %v914
    %v1141 = vpop.f32.mrb[0].mxu0
    %v1142 = vadd.f32 0.0, %v1141
    %v1143 = vpop.f32.mrb[0].mxu0
    %v1144 = vadd.f32 0.0, %v1143
    %v1145 = vpop.f32.mrb[0].mxu0
    %v1146 = vpop.f32.mrb[0].mxu0
    %1147 = vdwg.mxu0
    %1148 = vmatprep.subr.bf16.mxu0 %v1046
    %1149 = vmatpush1.bf16.msra.mxu0 %v1045
    %1150 = vmatprep.subr.bf16.mxu0 %v1050
    %1151 = vmatpush1.bf16.msra.mxu0 %v1049
    %1152 = vmatprep.subr.bf16.mxu0 %v1054
    %1153 = vmatpush1.bf16.msra.mxu0 %v1053
    %1154 = vmatprep.subr.bf16.mxu0 %v1058
    %1155 = vmatpush1.bf16.msra.mxu0 %v1057
    %1156 = vmatprep.subr.bf16.mxu0 %v1062
    %1157 = vmatpush1.bf16.msra.mxu0 %v1061
    %1158 = vmatprep.subr.bf16.mxu0 %v1066
    %1159 = vmatpush1.bf16.msra.mxu0 %v1065
    %1160 = vmatprep.subr.bf16.mxu0 %v1070
    %1161 = vmatpush1.bf16.msra.mxu0 %v1069
    %1162 = vmatprep.subr.bf16.mxu0 %v1074
    %1163 = vmatpush1.bf16.msra.mxu0 %v1073
    %1164 = vmatprep.subr.bf16.mxu0 0
    %1165 = vmatpush1.bf16.msra.mxu0 0
    %1166 = vmatprep.subr.bf16.mxu0 0
    %1167 = vmatpush1.bf16.msra.mxu0 0
    %1168 = vmatprep.subr.bf16.mxu0 0
    %1169 = vmatpush1.bf16.msra.mxu0 0
    %1170 = vmatprep.subr.bf16.mxu0 0
    %1171 = vmatpush1.bf16.msra.mxu0 0
    %1172 = vmatprep.subr.bf16.mxu0 0
    %1173 = vmatpush1.bf16.msra.mxu0 0
    %1174 = vmatprep.subr.bf16.mxu0 0
    %1175 = vmatpush1.bf16.msra.mxu0 0
    %1176 = vmatprep.subr.bf16.mxu0 0
    %1177 = vmatpush1.bf16.msra.mxu0 0
    %1178 = vmatprep.subr.bf16.mxu0 0
    %1179 = vmatpush1.bf16.msra.mxu0 0
    %1180 = vmatprep.mubr.bf16.mxu0 0
    %1181 = vmatmul.mubr.bf16.gmra.mrb[0].mxu0 %v914
    %v1182 = vpop.f32.mrb[0].mxu0
    %v1183 = vadd.f32 0.0, %v1182
    %v1184 = vpop.f32.mrb[0].mxu0
    %v1185 = vadd.f32 0.0, %v1184
    %v1186 = vpop.f32.mrb[0].mxu0
    %v1187 = vpop.f32.mrb[0].mxu0
    %1188 = vdwg.mxu0
    %v1189 = vadd.f32 %v665, %v1142
    %v1190 = vadd.f32 %v667, %v1144
    %v1191 = vadd.f32 %v706, %v1183
    %v1192 = vadd.f32 %v708, %v1185
    %v1193 = vpack.c.bf16 %v114, %v114
    %s1194 = scalar_lea.vmem %s2, 16
    %v1195 = vld [vmem:[%s1194] sm:$0xf]
    %v1196 = vld [vmem:[%s1194 + $0x4] sm:$0xf]
    %s1197 = scalar_lea.vmem %s3, 32
    %v1198 = vld [vmem:[%s1197] sm:$0xff]
    %v1199 = vld [vmem:[%s1197 + $0x8] sm:$0xff]
    %1201 = vset.pattern.permute.xlu0 0
    %1202 = vperm.xlu0 %1201, %v1198
    %v1203 = vpop.permute.xlu0 %1202
    %1206 = vset.pattern.permute.xlu0 0
    %1207 = vperm.xlu0 %1206, %v1199
    %v1208 = vpop.permute.xlu0 %1207
    %v1212 = vunpack.c.l.b16 %v1195
    %v1213 = vunpack.c.l.b16 %v1196
    %v1214 = vpack.c.b16 %v1213, %v1212
    %v1216 = vsel %vm148, %v1214, 0
    %v1219 = vand.u32 %v1193, %v155
    %1221 = vmatprep.subr.bf16.mxu0 0
    %1222 = vmatpush1.bf16.msra.mxu0 %v1219
    %1223 = vmatprep.subr.bf16.mxu0 0
    %1224 = vmatpush1.bf16.msra.mxu0 0
    %1225 = vmatprep.subr.bf16.mxu0 0
    %1226 = vmatpush1.bf16.msra.mxu0 0
    %1227 = vmatprep.subr.bf16.mxu0 0
    %1228 = vmatpush1.bf16.msra.mxu0 0
    %1229 = vmatprep.subr.bf16.mxu0 0
    %1230 = vmatpush1.bf16.msra.mxu0 0
    %1231 = vmatprep.subr.bf16.mxu0 0
    %1232 = vmatpush1.bf16.msra.mxu0 0
    %1233 = vmatprep.subr.bf16.mxu0 0
    %1234 = vmatpush1.bf16.msra.mxu0 0
    %1235 = vmatprep.subr.bf16.mxu0 0
    %1236 = vmatpush1.bf16.msra.mxu0 0
    %1237 = vmatprep.subr.bf16.mxu0 0
    %1238 = vmatpush1.bf16.msra.mxu0 0
    %1239 = vmatprep.subr.bf16.mxu0 0
    %1240 = vmatpush1.bf16.msra.mxu0 0
    %1241 = vmatprep.subr.bf16.mxu0 0
    %1242 = vmatpush1.bf16.msra.mxu0 0
    %1243 = vmatprep.subr.bf16.mxu0 0
    %1244 = vmatpush1.bf16.msra.mxu0 0
    %1245 = vmatprep.subr.bf16.mxu0 0
    %1246 = vmatpush1.bf16.msra.mxu0 0
    %1247 = vmatprep.subr.bf16.mxu0 0
    %1248 = vmatpush1.bf16.msra.mxu0 0
    %1249 = vmatprep.subr.bf16.mxu0 0
    %1250 = vmatpush1.bf16.msra.mxu0 0
    %1251 = vmatprep.subr.bf16.mxu0 0
    %1252 = vmatpush1.bf16.msra.mxu0 0
    %1253 = vmatprep.mubr.bf16.mxu0 0
    %1254 = vmatmul.mubr.bf16.gmra.mrb[0].mxu0 %v1216
    %v1255 = vpop.f32.mrb[0].mxu0
    %v1256 = vadd.f32 %v1203, %v1255
    %v1257 = vpop.f32.mrb[0].mxu0
    %v1258 = vpop.f32.mrb[0].mxu0
    %v1259 = vadd.f32 %v1208, %v1258
    %v1260 = vpop.f32.mrb[0].mxu0
    %1261 = vdwg.mxu0
    %v1262 = vmax.f32 %v1256, 0.0
    %v1263 = vmax.f32 %v1259, 0.0
    %v1264 = vpack.c.bf16 %v1263, %v1262
    %s1265 = scalar_lea.vmem [#allocation7], 8
    %v1266 = vld [vmem:[%s1265] sm:$0xf]
    %s1267 = scalar_lea.vmem %s5, 16
    %v1268 = vld [vmem:[%s1267] sm:$0xff]
    %1270 = vset.pattern.permute.xlu0 0
    %1271 = vperm.xlu0 %1270, %v1268
    %v1272 = vpop.permute.xlu0 %1271
    %v1275 = vsel %vm210, %v1266, 0
    %1277 = vmatprep.subr.bf16.mxu0 0
    %1278 = vmatpush1.bf16.msra.mxu0 %v1264
    %1279 = vmatprep.subr.bf16.mxu0 0
    %1280 = vmatpush1.bf16.msra.mxu0 0
    %1281 = vmatprep.subr.bf16.mxu0 0
    %1282 = vmatpush1.bf16.msra.mxu0 0
    %1283 = vmatprep.subr.bf16.mxu0 0
    %1284 = vmatpush1.bf16.msra.mxu0 0
    %1285 = vmatprep.subr.bf16.mxu0 0
    %1286 = vmatpush1.bf16.msra.mxu0 0
    %1287 = vmatprep.subr.bf16.mxu0 0
    %1288 = vmatpush1.bf16.msra.mxu0 0
    %1289 = vmatprep.subr.bf16.mxu0 0
    %1290 = vmatpush1.bf16.msra.mxu0 0
    %1291 = vmatprep.subr.bf16.mxu0 0
    %1292 = vmatpush1.bf16.msra.mxu0 0
    %1293 = vmatprep.subr.bf16.mxu0 0
    %1294 = vmatpush1.bf16.msra.mxu0 0
    %1295 = vmatprep.subr.bf16.mxu0 0
    %1296 = vmatpush1.bf16.msra.mxu0 0
    %1297 = vmatprep.subr.bf16.mxu0 0
    %1298 = vmatpush1.bf16.msra.mxu0 0
    %1299 = vmatprep.subr.bf16.mxu0 0
    %1300 = vmatpush1.bf16.msra.mxu0 0
    %1301 = vmatprep.subr.bf16.mxu0 0
    %1302 = vmatpush1.bf16.msra.mxu0 0
    %1303 = vmatprep.subr.bf16.mxu0 0
    %1304 = vmatpush1.bf16.msra.mxu0 0
    %1305 = vmatprep.subr.bf16.mxu0 0
    %1306 = vmatpush1.bf16.msra.mxu0 0
    %1307 = vmatprep.subr.bf16.mxu0 0
    %1308 = vmatpush1.bf16.msra.mxu0 0
    %1309 = vmatprep.mubr.bf16.mxu0 0
    %1310 = vmatmul.mubr.bf16.gmra.mrb[0].mxu0 %v1275
    %v1311 = vpop.f32.mrb[0].mxu0
    %v1312 = vadd.f32 %v1272, %v1311
    %v1313 = vpop.f32.mrb[0].mxu0
    %v1314 = vpop.f32.mrb[0].mxu0
    %v1315 = vpop.f32.mrb[0].mxu0
    %1316 = vdwg.mxu0
    %v1317 = vmax.f32 %v1312, 0.0
    %v1318 = vpack.c.bf16 %v1317, %v1317
    %s1319 = scalar_lea.vmem %s6, 24
    %v1320 = vld [vmem:[%s1319] sm:$0xf]
    %v1321 = vld [vmem:[%s1319 + $0x4] sm:$0xf]
    %v1322 = vld [vmem:[%s1319 + $0x8] sm:$0x3]
    %v1326 = vunpack.c.l.b16 %v1320
    %v1327 = vunpack.c.l.b16 %v1321
    %v1328 = vunpack.c.l.b16 %v1322
    %v1329 = vpack.c.b16 %v1327, %v1326
    %v1330 = vpack.c.b16 %v1328, %v1328
    %v1332 = vsel %vm267, %v1329, 0
    %v1335 = vsel %vm267, %v1330, 0
    %v1338 = vsel %vm274, %v1318, 0
    %1340 = vmatprep.subr.bf16.mxu0 0
    %1341 = vmatpush1.bf16.msra.mxu0 %v1338
    %1342 = vmatprep.subr.bf16.mxu0 0
    %1343 = vmatpush1.bf16.msra.mxu0 0
    %1344 = vmatprep.subr.bf16.mxu0 0
    %1345 = vmatpush1.bf16.msra.mxu0 0
    %1346 = vmatprep.subr.bf16.mxu0 0
    %1347 = vmatpush1.bf16.msra.mxu0 0
    %1348 = vmatprep.subr.bf16.mxu0 0
    %1349 = vmatpush1.bf16.msra.mxu0 0
    %1350 = vmatprep.subr.bf16.mxu0 0
    %1351 = vmatpush1.bf16.msra.mxu0 0
    %1352 = vmatprep.subr.bf16.mxu0 0
    %1353 = vmatpush1.bf16.msra.mxu0 0
    %1354 = vmatprep.subr.bf16.mxu0 0
    %1355 = vmatpush1.bf16.msra.mxu0 0
    %1356 = vmatprep.subr.bf16.mxu0 0
    %1357 = vmatpush1.bf16.msra.mxu0 0
    %1358 = vmatprep.subr.bf16.mxu0 0
    %1359 = vmatpush1.bf16.msra.mxu0 0
    %1360 = vmatprep.subr.bf16.mxu0 0
    %1361 = vmatpush1.bf16.msra.mxu0 0
    %1362 = vmatprep.subr.bf16.mxu0 0
    %1363 = vmatpush1.bf16.msra.mxu0 0
    %1364 = vmatprep.subr.bf16.mxu0 0
    %1365 = vmatpush1.bf16.msra.mxu0 0
    %1366 = vmatprep.subr.bf16.mxu0 0
    %1367 = vmatpush1.bf16.msra.mxu0 0
    %1368 = vmatprep.subr.bf16.mxu0 0
    %1369 = vmatpush1.bf16.msra.mxu0 0
    %1370 = vmatprep.subr.bf16.mxu0 0
    %1371 = vmatpush1.bf16.msra.mxu0 0
    %1372 = vmatprep.mubr.bf16.mxu0 0
    %1373 = vmatmul.mubr.bf16.gmra.mrb[0].mxu0 %v1332
    %v1374 = vpop.f32.mrb[0].mxu0
    %v1375 = vadd.f32 0.0, %v1374
    %v1376 = vpop.f32.mrb[0].mxu0
    %v1377 = vpop.f32.mrb[0].mxu0
    %v1378 = vadd.f32 0.0, %v1377
    %v1379 = vpop.f32.mrb[0].mxu0
    %1380 = vmatprep.mubr.bf16.mxu0 0
    %1381 = vmatmul.mubr.bf16.gmra.mrb[0].mxu0 %v1335
    %v1382 = vpop.f32.mrb[0].mxu0
    %v1383 = vadd.f32 0.0, %v1382
    %v1384 = vpop.f32.mrb[0].mxu0
    %v1385 = vpop.f32.mrb[0].mxu0
    %v1386 = vpop.f32.mrb[0].mxu0
    %1387 = vdwg.mxu0
    %v1388 = vadd.f32 %v1378, %v329
    %v1389 = vadd.f32 %v1383, %v334
    %1390 = vst [vmem:[#allocation11 + $0x10] sm:$0xff] %v1388
    %1391 = vst [vmem:[#allocation11 + $0x48] sm:$0xf] %v1389
    %v1392 = vpack.c.bf16 %v1375, %v1375
    %v1393 = vld [vmem:[#allocation10] sm:$0xff]
    %v1394 = vld [vmem:[#allocation10 + $0x8] sm:$0xff]
    %v1395 = vld [vmem:[#allocation10 + $0x10] sm:$0xff]
    %v1396 = vld [vmem:[#allocation10 + $0x18] sm:$0xff]
    %v1397 = vld [vmem:[#allocation10 + $0x20] sm:$0xff]
    %v1398 = vld [vmem:[#allocation10 + $0x28] sm:$0xff]
    %v1399 = vld [vmem:[#allocation10 + $0x30] sm:$0xff]
    %v1400 = vld [vmem:[#allocation10 + $0x38] sm:$0xff]
    %v1401 = vld [vmem:[#allocation10 + $0x40] sm:$0xff]
    %v1402 = vld [vmem:[#allocation10 + $0x48] sm:$0xff]
    %v1403 = vld [vmem:[#allocation10 + $0x50] sm:$0xff]
    %v1404 = vld [vmem:[#allocation10 + $0x58] sm:$0xff]
    %v1405 = vld [vmem:[#allocation10 + $0x60] sm:$0xff]
    %v1406 = vld [vmem:[#allocation10 + $0x68] sm:$0xff]
    %v1407 = vld [vmem:[#allocation10 + $0x70] sm:$0xff]
    %v1408 = vld [vmem:[#allocation10 + $0x78] sm:$0xff]
    %v1409 = vld [vmem:[#allocation10 + $0x80] sm:$0xff]
    %v1410 = vld [vmem:[#allocation10 + $0x88] sm:$0xff]
    %v1411 = vld [vmem:[#allocation10 + $0x90] sm:$0xff]
    %v1412 = vld [vmem:[#allocation10 + $0x98] sm:$0xff]
    %v1413 = vld [vmem:[#allocation10 + $0xa0] sm:$0xff]
    %v1414 = vld [vmem:[#allocation10 + $0xa8] sm:$0xff]
    %v1415 = vld [vmem:[#allocation10 + $0xb0] sm:$0xff]
    %v1416 = vld [vmem:[#allocation10 + $0xb8] sm:$0xff]
    %v1417 = vld [vmem:[#allocation10 + $0xc0] sm:$0xff]
    %v1418 = vld [vmem:[#allocation10 + $0xc8] sm:$0xff]
    %v1419 = vld [vmem:[#allocation10 + $0xd0] sm:$0xff]
    %v1420 = vld [vmem:[#allocation10 + $0xd8] sm:$0xff]
    %v1421 = vld [vmem:[#allocation10 + $0xe0] sm:$0xff]
    %v1422 = vld [vmem:[#allocation10 + $0xe8] sm:$0xff]
    %v1423 = vld [vmem:[#allocation10 + $0xf0] sm:$0xff]
    %v1424 = vld [vmem:[#allocation10 + $0xf8] sm:$0xff]
    %v1457 = vunpack.c.l.b16 %v1393
    %v1458 = vunpack.c.h.b16 %v1393
    %v1459 = vunpack.c.l.b16 %v1394
    %v1460 = vunpack.c.h.b16 %v1394
    %v1461 = vunpack.c.l.b16 %v1395
    %v1462 = vunpack.c.h.b16 %v1395
    %v1463 = vunpack.c.l.b16 %v1396
    %v1464 = vunpack.c.h.b16 %v1396
    %v1465 = vunpack.c.l.b16 %v1397
    %v1466 = vunpack.c.h.b16 %v1397
    %v1467 = vunpack.c.l.b16 %v1398
    %v1468 = vunpack.c.h.b16 %v1398
    %v1469 = vunpack.c.l.b16 %v1399
    %v1470 = vunpack.c.h.b16 %v1399
    %v1471 = vunpack.c.l.b16 %v1400
    %v1472 = vunpack.c.h.b16 %v1400
    %v1473 = vunpack.c.l.b16 %v1401
    %v1474 = vunpack.c.h.b16 %v1401
    %v1475 = vunpack.c.l.b16 %v1402
    %v1476 = vunpack.c.h.b16 %v1402
    %v1477 = vunpack.c.l.b16 %v1403
    %v1478 = vunpack.c.h.b16 %v1403
    %v1479 = vunpack.c.l.b16 %v1404
    %v1480 = vunpack.c.h.b16 %v1404
    %v1481 = vunpack.c.l.b16 %v1405
    %v1482 = vunpack.c.h.b16 %v1405
    %v1483 = vunpack.c.l.b16 %v1406
    %v1484 = vunpack.c.h.b16 %v1406
    %v1485 = vunpack.c.l.b16 %v1407
    %v1486 = vunpack.c.h.b16 %v1407
    %v1487 = vunpack.c.l.b16 %v1408
    %v1488 = vunpack.c.h.b16 %v1408
    %v1489 = vunpack.c.l.b16 %v1409
    %v1490 = vunpack.c.h.b16 %v1409
    %v1491 = vunpack.c.l.b16 %v1410
    %v1492 = vunpack.c.h.b16 %v1410
    %v1493 = vunpack.c.l.b16 %v1411
    %v1494 = vunpack.c.h.b16 %v1411
    %v1495 = vunpack.c.l.b16 %v1412
    %v1496 = vunpack.c.h.b16 %v1412
    %v1497 = vunpack.c.l.b16 %v1413
    %v1498 = vunpack.c.h.b16 %v1413
    %v1499 = vunpack.c.l.b16 %v1414
    %v1500 = vunpack.c.h.b16 %v1414
    %v1501 = vunpack.c.l.b16 %v1415
    %v1502 = vunpack.c.h.b16 %v1415
    %v1503 = vunpack.c.l.b16 %v1416
    %v1504 = vunpack.c.h.b16 %v1416
    %v1505 = vunpack.c.l.b16 %v1417
    %v1506 = vunpack.c.h.b16 %v1417
    %v1507 = vunpack.c.l.b16 %v1418
    %v1508 = vunpack.c.h.b16 %v1418
    %v1509 = vunpack.c.l.b16 %v1419
    %v1510 = vunpack.c.h.b16 %v1419
    %v1511 = vunpack.c.l.b16 %v1420
    %v1512 = vunpack.c.h.b16 %v1420
    %v1513 = vunpack.c.l.b16 %v1421
    %v1514 = vunpack.c.h.b16 %v1421
    %v1515 = vunpack.c.l.b16 %v1422
    %v1516 = vunpack.c.h.b16 %v1422
    %v1517 = vunpack.c.l.b16 %v1423
    %v1518 = vunpack.c.h.b16 %v1423
    %v1519 = vunpack.c.l.b16 %v1424
    %v1520 = vunpack.c.h.b16 %v1424
    %v1521 = vpack.c.b16 %v1461, %v1457
    %v1522 = vpack.c.b16 %v1462, %v1458
    %v1523 = vpack.c.b16 %v1463, %v1459
    %v1524 = vpack.c.b16 %v1464, %v1460
    %v1525 = vpack.c.b16 %v1469, %v1465
    %v1526 = vpack.c.b16 %v1470, %v1466
    %v1527 = vpack.c.b16 %v1471, %v1467
    %v1528 = vpack.c.b16 %v1472, %v1468
    %v1529 = vpack.c.b16 %v1477, %v1473
    %v1530 = vpack.c.b16 %v1478, %v1474
    %v1531 = vpack.c.b16 %v1479, %v1475
    %v1532 = vpack.c.b16 %v1480, %v1476
    %v1533 = vpack.c.b16 %v1485, %v1481
    %v1534 = vpack.c.b16 %v1486, %v1482
    %v1535 = vpack.c.b16 %v1487, %v1483
    %v1536 = vpack.c.b16 %v1488, %v1484
    %v1537 = vpack.c.b16 %v1493, %v1489
    %v1538 = vpack.c.b16 %v1494, %v1490
    %v1539 = vpack.c.b16 %v1495, %v1491
    %v1540 = vpack.c.b16 %v1496, %v1492
    %v1541 = vpack.c.b16 %v1501, %v1497
    %v1542 = vpack.c.b16 %v1502, %v1498
    %v1543 = vpack.c.b16 %v1503, %v1499
    %v1544 = vpack.c.b16 %v1504, %v1500
    %v1545 = vpack.c.b16 %v1509, %v1505
    %v1546 = vpack.c.b16 %v1510, %v1506
    %v1547 = vpack.c.b16 %v1511, %v1507
    %v1548 = vpack.c.b16 %v1512, %v1508
    %v1549 = vpack.c.b16 %v1517, %v1513
    %v1550 = vpack.c.b16 %v1518, %v1514
    %v1551 = vpack.c.b16 %v1519, %v1515
    %v1552 = vpack.c.b16 %v1520, %v1516
    %1585 = vmatprep.subr.bf16.mxu0 %v1522
    %1586 = vmatpush1.bf16.msra.mxu0 %v1521
    %1587 = vmatprep.subr.bf16.mxu0 %v1526
    %1588 = vmatpush1.bf16.msra.mxu0 %v1525
    %1589 = vmatprep.subr.bf16.mxu0 %v1530
    %1590 = vmatpush1.bf16.msra.mxu0 %v1529
    %1591 = vmatprep.subr.bf16.mxu0 %v1534
    %1592 = vmatpush1.bf16.msra.mxu0 %v1533
    %1593 = vmatprep.subr.bf16.mxu0 %v1538
    %1594 = vmatpush1.bf16.msra.mxu0 %v1537
    %1595 = vmatprep.subr.bf16.mxu0 %v1542
    %1596 = vmatpush1.bf16.msra.mxu0 %v1541
    %1597 = vmatprep.subr.bf16.mxu0 %v1546
    %1598 = vmatpush1.bf16.msra.mxu0 %v1545
    %1599 = vmatprep.subr.bf16.mxu0 %v1550
    %1600 = vmatpush1.bf16.msra.mxu0 %v1549
    %1601 = vmatprep.subr.bf16.mxu0 0
    %1602 = vmatpush1.bf16.msra.mxu0 0
    %1603 = vmatprep.subr.bf16.mxu0 0
    %1604 = vmatpush1.bf16.msra.mxu0 0
    %1605 = vmatprep.subr.bf16.mxu0 0
    %1606 = vmatpush1.bf16.msra.mxu0 0
    %1607 = vmatprep.subr.bf16.mxu0 0
    %1608 = vmatpush1.bf16.msra.mxu0 0
    %1609 = vmatprep.subr.bf16.mxu0 0
    %1610 = vmatpush1.bf16.msra.mxu0 0
    %1611 = vmatprep.subr.bf16.mxu0 0
    %1612 = vmatpush1.bf16.msra.mxu0 0
    %1613 = vmatprep.subr.bf16.mxu0 0
    %1614 = vmatpush1.bf16.msra.mxu0 0
    %1615 = vmatprep.subr.bf16.mxu0 0
    %1616 = vmatpush1.bf16.msra.mxu0 0
    %1617 = vmatprep.mubr.bf16.mxu0 0
    %1618 = vmatmul.mubr.bf16.gmra.mrb[0].mxu0 %v1392
    %v1619 = vpop.f32.mrb[0].mxu0
    %v1620 = vadd.f32 0.0, %v1619
    %v1621 = vpop.f32.mrb[0].mxu0
    %v1622 = vadd.f32 0.0, %v1621
    %v1623 = vpop.f32.mrb[0].mxu0
    %v1624 = vpop.f32.mrb[0].mxu0
    %1625 = vdwg.mxu0
    %1626 = vmatprep.subr.bf16.mxu0 %v1524
    %1627 = vmatpush1.bf16.msra.mxu0 %v1523
    %1628 = vmatprep.subr.bf16.mxu0 %v1528
    %1629 = vmatpush1.bf16.msra.mxu0 %v1527
    %1630 = vmatprep.subr.bf16.mxu0 %v1532
    %1631 = vmatpush1.bf16.msra.mxu0 %v1531
    %1632 = vmatprep.subr.bf16.mxu0 %v1536
    %1633 = vmatpush1.bf16.msra.mxu0 %v1535
    %1634 = vmatprep.subr.bf16.mxu0 %v1540
    %1635 = vmatpush1.bf16.msra.mxu0 %v1539
    %1636 = vmatprep.subr.bf16.mxu0 %v1544
    %1637 = vmatpush1.bf16.msra.mxu0 %v1543
    %1638 = vmatprep.subr.bf16.mxu0 %v1548
    %1639 = vmatpush1.bf16.msra.mxu0 %v1547
    %1640 = vmatprep.subr.bf16.mxu0 %v1552
    %1641 = vmatpush1.bf16.msra.mxu0 %v1551
    %1642 = vmatprep.subr.bf16.mxu0 0
    %1643 = vmatpush1.bf16.msra.mxu0 0
    %1644 = vmatprep.subr.bf16.mxu0 0
    %1645 = vmatpush1.bf16.msra.mxu0 0
    %1646 = vmatprep.subr.bf16.mxu0 0
    %1647 = vmatpush1.bf16.msra.mxu0 0
    %1648 = vmatprep.subr.bf16.mxu0 0
    %1649 = vmatpush1.bf16.msra.mxu0 0
    %1650 = vmatprep.subr.bf16.mxu0 0
    %1651 = vmatpush1.bf16.msra.mxu0 0
    %1652 = vmatprep.subr.bf16.mxu0 0
    %1653 = vmatpush1.bf16.msra.mxu0 0
    %1654 = vmatprep.subr.bf16.mxu0 0
    %1655 = vmatpush1.bf16.msra.mxu0 0
    %1656 = vmatprep.subr.bf16.mxu0 0
    %1657 = vmatpush1.bf16.msra.mxu0 0
    %1658 = vmatprep.mubr.bf16.mxu0 0
    %1659 = vmatmul.mubr.bf16.gmra.mrb[0].mxu0 %v1392
    %v1660 = vpop.f32.mrb[0].mxu0
    %v1661 = vadd.f32 0.0, %v1660
    %v1662 = vpop.f32.mrb[0].mxu0
    %v1663 = vadd.f32 0.0, %v1662
    %v1664 = vpop.f32.mrb[0].mxu0
    %v1665 = vpop.f32.mrb[0].mxu0
    %1666 = vdwg.mxu0
    %v1667 = vadd.f32 %v1189, %v1620
    %v1668 = vadd.f32 %v1190, %v1622
    %v1669 = vadd.f32 %v1191, %v1661
    %v1670 = vadd.f32 %v1192, %v1663
    %v1673 = vcombine.high %v114, %v114
    %v1674 = vcombine.high %v115, %v115
    %v1677 = vpack.c.bf16 %v1673, %v1673
    %v1678 = vpack.c.bf16 %v115, %v115
    %v1679 = vpack.c.bf16 %v1674, %v1674
    %v1680 = vpack.c.bf16 %v116, %v116
    %s1681 = scalar_lea.vmem %s2, 24
    %v1682 = vld [vmem:[%s1681] sm:$0xf]
    %v1683 = vld [vmem:[%s1681 + $0x4] sm:$0xf]
    %s1684 = scalar_lea.vmem %s3, 48
    %v1685 = vld [vmem:[%s1684] sm:$0xff]
    %v1686 = vld [vmem:[%s1684 + $0x8] sm:$0xff]
    %1688 = vset.pattern.permute.xlu0 0
    %1689 = vperm.xlu0 %1688, %v1685
    %v1690 = vpop.permute.xlu0 %1689
    %1693 = vset.pattern.permute.xlu0 0
    %1694 = vperm.xlu0 %1693, %v1686
    %v1695 = vpop.permute.xlu0 %1694
    %v1699 = vunpack.c.l.b16 %v1682
    %v1700 = vunpack.c.l.b16 %v1683
    %v1701 = vpack.c.b16 %v1700, %v1699
    %v1703 = vsel %vm148, %v1701, 0
    %v1706 = vand.u32 %v1677, %v155
    %v1709 = vand.u32 %v1678, %v155
    %v1712 = vand.u32 %v1679, %v155
    %v1715 = vand.u32 %v1680, %v155
    %1717 = vmatprep.subr.bf16.mxu0 %v1709
    %1718 = vmatpush1.bf16.msra.mxu0 %v1706
    %1719 = vmatprep.subr.bf16.mxu0 0
    %1720 = vmatpush1.bf16.msra.mxu0 0
    %1721 = vmatprep.subr.bf16.mxu0 0
    %1722 = vmatpush1.bf16.msra.mxu0 0
    %1723 = vmatprep.subr.bf16.mxu0 0
    %1724 = vmatpush1.bf16.msra.mxu0 0
    %1725 = vmatprep.subr.bf16.mxu0 0
    %1726 = vmatpush1.bf16.msra.mxu0 0
    %1727 = vmatprep.subr.bf16.mxu0 0
    %1728 = vmatpush1.bf16.msra.mxu0 0
    %1729 = vmatprep.subr.bf16.mxu0 0
    %1730 = vmatpush1.bf16.msra.mxu0 0
    %1731 = vmatprep.subr.bf16.mxu0 0
    %1732 = vmatpush1.bf16.msra.mxu0 0
    %1733 = vmatprep.subr.bf16.mxu0 0
    %1734 = vmatpush1.bf16.msra.mxu0 0
    %1735 = vmatprep.subr.bf16.mxu0 0
    %1736 = vmatpush1.bf16.msra.mxu0 0
    %1737 = vmatprep.subr.bf16.mxu0 0
    %1738 = vmatpush1.bf16.msra.mxu0 0
    %1739 = vmatprep.subr.bf16.mxu0 0
    %1740 = vmatpush1.bf16.msra.mxu0 0
    %1741 = vmatprep.subr.bf16.mxu0 0
    %1742 = vmatpush1.bf16.msra.mxu0 0
    %1743 = vmatprep.subr.bf16.mxu0 0
    %1744 = vmatpush1.bf16.msra.mxu0 0
    %1745 = vmatprep.subr.bf16.mxu0 0
    %1746 = vmatpush1.bf16.msra.mxu0 0
    %1747 = vmatprep.subr.bf16.mxu0 0
    %1748 = vmatpush1.bf16.msra.mxu0 0
    %1749 = vmatprep.mubr.bf16.mxu0 0
    %1750 = vmatmul.mubr.bf16.gmra.mrb[0].mxu0 %v1703
    %v1751 = vpop.f32.mrb[0].mxu0
    %v1752 = vadd.f32 %v1690, %v1751
    %v1753 = vpop.f32.mrb[0].mxu0
    %v1754 = vadd.f32 %v1690, %v1753
    %v1755 = vpop.f32.mrb[0].mxu0
    %v1756 = vadd.f32 %v1695, %v1755
    %v1757 = vpop.f32.mrb[0].mxu0
    %v1758 = vadd.f32 %v1695, %v1757
    %1759 = vdwg.mxu0
    %1760 = vmatprep.subr.bf16.mxu0 %v1715
    %1761 = vmatpush1.bf16.msra.mxu0 %v1712
    %1762 = vmatprep.subr.bf16.mxu0 0
    %1763 = vmatpush1.bf16.msra.mxu0 0
    %1764 = vmatprep.subr.bf16.mxu0 0
    %1765 = vmatpush1.bf16.msra.mxu0 0
    %1766 = vmatprep.subr.bf16.mxu0 0
    %1767 = vmatpush1.bf16.msra.mxu0 0
    %1768 = vmatprep.subr.bf16.mxu0 0
    %1769 = vmatpush1.bf16.msra.mxu0 0
    %1770 = vmatprep.subr.bf16.mxu0 0
    %1771 = vmatpush1.bf16.msra.mxu0 0
    %1772 = vmatprep.subr.bf16.mxu0 0
    %1773 = vmatpush1.bf16.msra.mxu0 0
    %1774 = vmatprep.subr.bf16.mxu0 0
    %1775 = vmatpush1.bf16.msra.mxu0 0
    %1776 = vmatprep.subr.bf16.mxu0 0
    %1777 = vmatpush1.bf16.msra.mxu0 0
    %1778 = vmatprep.subr.bf16.mxu0 0
    %1779 = vmatpush1.bf16.msra.mxu0 0
    %1780 = vmatprep.subr.bf16.mxu0 0
    %1781 = vmatpush1.bf16.msra.mxu0 0
    %1782 = vmatprep.subr.bf16.mxu0 0
    %1783 = vmatpush1.bf16.msra.mxu0 0
    %1784 = vmatprep.subr.bf16.mxu0 0
    %1785 = vmatpush1.bf16.msra.mxu0 0
    %1786 = vmatprep.subr.bf16.mxu0 0
    %1787 = vmatpush1.bf16.msra.mxu0 0
    %1788 = vmatprep.subr.bf16.mxu0 0
    %1789 = vmatpush1.bf16.msra.mxu0 0
    %1790 = vmatprep.subr.bf16.mxu0 0
    %1791 = vmatpush1.bf16.msra.mxu0 0
    %1792 = vmatprep.mubr.bf16.mxu0 0
    %1793 = vmatmul.mubr.bf16.gmra.mrb[0].mxu0 %v1703
    %v1794 = vpop.f32.mrb[0].mxu0
    %v1795 = vadd.f32 %v1690, %v1794
    %v1796 = vpop.f32.mrb[0].mxu0
    %v1797 = vadd.f32 %v1690, %v1796
    %v1798 = vpop.f32.mrb[0].mxu0
    %v1799 = vadd.f32 %v1695, %v1798
    %v1800 = vpop.f32.mrb[0].mxu0
    %v1801 = vadd.f32 %v1695, %v1800
    %1802 = vdwg.mxu0
    %v1803 = vmax.f32 %v1752, 0.0
    %v1804 = vmax.f32 %v1754, 0.0
    %v1805 = vmax.f32 %v1795, 0.0
    %v1806 = vmax.f32 %v1797, 0.0
    %v1807 = vmax.f32 %v1756, 0.0
    %v1808 = vmax.f32 %v1758, 0.0
    %v1809 = vmax.f32 %v1799, 0.0
    %v1810 = vmax.f32 %v1801, 0.0
    %v1811 = vpack.c.bf16 %v1807, %v1803
    %v1812 = vpack.c.bf16 %v1808, %v1804
    %v1813 = vpack.c.bf16 %v1809, %v1805
    %v1814 = vpack.c.bf16 %v1810, %v1806
    %s1815 = scalar_lea.vmem [#allocation7], 12
    %v1816 = vld [vmem:[%s1815] sm:$0xf]
    %s1817 = scalar_lea.vmem %s5, 24
    %v1818 = vld [vmem:[%s1817] sm:$0xff]
    %1820 = vset.pattern.permute.xlu0 0
    %1821 = vperm.xlu0 %1820, %v1818
    %v1822 = vpop.permute.xlu0 %1821
    %v1825 = vsel %vm210, %v1816, 0
    %1827 = vmatprep.subr.bf16.mxu0 %v1812
    %1828 = vmatpush1.bf16.msra.mxu0 %v1811
    %1829 = vmatprep.subr.bf16.mxu0 0
    %1830 = vmatpush1.bf16.msra.mxu0 0
    %1831 = vmatprep.subr.bf16.mxu0 0
    %1832 = vmatpush1.bf16.msra.mxu0 0
    %1833 = vmatprep.subr.bf16.mxu0 0
    %1834 = vmatpush1.bf16.msra.mxu0 0
    %1835 = vmatprep.subr.bf16.mxu0 0
    %1836 = vmatpush1.bf16.msra.mxu0 0
    %1837 = vmatprep.subr.bf16.mxu0 0
    %1838 = vmatpush1.bf16.msra.mxu0 0
    %1839 = vmatprep.subr.bf16.mxu0 0
    %1840 = vmatpush1.bf16.msra.mxu0 0
    %1841 = vmatprep.subr.bf16.mxu0 0
    %1842 = vmatpush1.bf16.msra.mxu0 0
    %1843 = vmatprep.subr.bf16.mxu0 0
    %1844 = vmatpush1.bf16.msra.mxu0 0
    %1845 = vmatprep.subr.bf16.mxu0 0
    %1846 = vmatpush1.bf16.msra.mxu0 0
    %1847 = vmatprep.subr.bf16.mxu0 0
    %1848 = vmatpush1.bf16.msra.mxu0 0
    %1849 = vmatprep.subr.bf16.mxu0 0
    %1850 = vmatpush1.bf16.msra.mxu0 0
    %1851 = vmatprep.subr.bf16.mxu0 0
    %1852 = vmatpush1.bf16.msra.mxu0 0
    %1853 = vmatprep.subr.bf16.mxu0 0
    %1854 = vmatpush1.bf16.msra.mxu0 0
    %1855 = vmatprep.subr.bf16.mxu0 0
    %1856 = vmatpush1.bf16.msra.mxu0 0
    %1857 = vmatprep.subr.bf16.mxu0 0
    %1858 = vmatpush1.bf16.msra.mxu0 0
    %1859 = vmatprep.mubr.bf16.mxu0 0
    %1860 = vmatmul.mubr.bf16.gmra.mrb[0].mxu0 %v1825
    %v1861 = vpop.f32.mrb[0].mxu0
    %v1862 = vadd.f32 %v1822, %v1861
    %v1863 = vpop.f32.mrb[0].mxu0
    %v1864 = vadd.f32 %v1822, %v1863
    %v1865 = vpop.f32.mrb[0].mxu0
    %v1866 = vpop.f32.mrb[0].mxu0
    %1867 = vdwg.mxu0
    %1868 = vmatprep.subr.bf16.mxu0 %v1814
    %1869 = vmatpush1.bf16.msra.mxu0 %v1813
    %1870 = vmatprep.subr.bf16.mxu0 0
    %1871 = vmatpush1.bf16.msra.mxu0 0
    %1872 = vmatprep.subr.bf16.mxu0 0
    %1873 = vmatpush1.bf16.msra.mxu0 0
    %1874 = vmatprep.subr.bf16.mxu0 0
    %1875 = vmatpush1.bf16.msra.mxu0 0
    %1876 = vmatprep.subr.bf16.mxu0 0
    %1877 = vmatpush1.bf16.msra.mxu0 0
    %1878 = vmatprep.subr.bf16.mxu0 0
    %1879 = vmatpush1.bf16.msra.mxu0 0
    %1880 = vmatprep.subr.bf16.mxu0 0
    %1881 = vmatpush1.bf16.msra.mxu0 0
    %1882 = vmatprep.subr.bf16.mxu0 0
    %1883 = vmatpush1.bf16.msra.mxu0 0
    %1884 = vmatprep.subr.bf16.mxu0 0
    %1885 = vmatpush1.bf16.msra.mxu0 0
    %1886 = vmatprep.subr.bf16.mxu0 0
    %1887 = vmatpush1.bf16.msra.mxu0 0
    %1888 = vmatprep.subr.bf16.mxu0 0
    %1889 = vmatpush1.bf16.msra.mxu0 0
    %1890 = vmatprep.subr.bf16.mxu0 0
    %1891 = vmatpush1.bf16.msra.mxu0 0
    %1892 = vmatprep.subr.bf16.mxu0 0
    %1893 = vmatpush1.bf16.msra.mxu0 0
    %1894 = vmatprep.subr.bf16.mxu0 0
    %1895 = vmatpush1.bf16.msra.mxu0 0
    %1896 = vmatprep.subr.bf16.mxu0 0
    %1897 = vmatpush1.bf16.msra.mxu0 0
    %1898 = vmatprep.subr.bf16.mxu0 0
    %1899 = vmatpush1.bf16.msra.mxu0 0
    %1900 = vmatprep.mubr.bf16.mxu0 0
    %1901 = vmatmul.mubr.bf16.gmra.mrb[0].mxu0 %v1825
    %v1902 = vpop.f32.mrb[0].mxu0
    %v1903 = vadd.f32 %v1822, %v1902
    %v1904 = vpop.f32.mrb[0].mxu0
    %v1905 = vadd.f32 %v1822, %v1904
    %v1906 = vpop.f32.mrb[0].mxu0
    %v1907 = vpop.f32.mrb[0].mxu0
    %1908 = vdwg.mxu0
    %v1909 = vmax.f32 %v1862, 0.0
    %v1910 = vmax.f32 %v1864, 0.0
    %v1911 = vmax.f32 %v1903, 0.0
    %v1912 = vmax.f32 %v1905, 0.0
    %v1913 = vpack.c.bf16 %v1909, %v1909
    %v1914 = vpack.c.bf16 %v1910, %v1910
    %v1915 = vpack.c.bf16 %v1911, %v1911
    %v1916 = vpack.c.bf16 %v1912, %v1912
    %s1917 = scalar_lea.vmem %s6, 36
    %v1918 = vld [vmem:[%s1917] sm:$0xf]
    %v1919 = vld [vmem:[%s1917 + $0x4] sm:$0xf]
    %v1920 = vld [vmem:[%s1917 + $0x8] sm:$0x3]
    %v1924 = vunpack.c.l.b16 %v1918
    %v1925 = vunpack.c.l.b16 %v1919
    %v1926 = vunpack.c.l.b16 %v1920
    %v1927 = vpack.c.b16 %v1925, %v1924
    %v1928 = vpack.c.b16 %v1926, %v1926
    %v1930 = vsel %vm267, %v1927, 0
    %v1933 = vsel %vm267, %v1928, 0
    %v1936 = vsel %vm274, %v1913, 0
    %v1939 = vsel %vm274, %v1914, 0
    %v1942 = vsel %vm274, %v1915, 0
    %v1945 = vsel %vm274, %v1916, 0
    %1947 = vmatprep.subr.bf16.mxu0 %v1939
    %1948 = vmatpush1.bf16.msra.mxu0 %v1936
    %1949 = vmatprep.subr.bf16.mxu0 0
    %1950 = vmatpush1.bf16.msra.mxu0 0
    %1951 = vmatprep.subr.bf16.mxu0 0
    %1952 = vmatpush1.bf16.msra.mxu0 0
    %1953 = vmatprep.subr.bf16.mxu0 0
    %1954 = vmatpush1.bf16.msra.mxu0 0
    %1955 = vmatprep.subr.bf16.mxu0 0
    %1956 = vmatpush1.bf16.msra.mxu0 0
    %1957 = vmatprep.subr.bf16.mxu0 0
    %1958 = vmatpush1.bf16.msra.mxu0 0
    %1959 = vmatprep.subr.bf16.mxu0 0
    %1960 = vmatpush1.bf16.msra.mxu0 0
    %1961 = vmatprep.subr.bf16.mxu0 0
    %1962 = vmatpush1.bf16.msra.mxu0 0
    %1963 = vmatprep.subr.bf16.mxu0 0
    %1964 = vmatpush1.bf16.msra.mxu0 0
    %1965 = vmatprep.subr.bf16.mxu0 0
    %1966 = vmatpush1.bf16.msra.mxu0 0
    %1967 = vmatprep.subr.bf16.mxu0 0
    %1968 = vmatpush1.bf16.msra.mxu0 0
    %1969 = vmatprep.subr.bf16.mxu0 0
    %1970 = vmatpush1.bf16.msra.mxu0 0
    %1971 = vmatprep.subr.bf16.mxu0 0
    %1972 = vmatpush1.bf16.msra.mxu0 0
    %1973 = vmatprep.subr.bf16.mxu0 0
    %1974 = vmatpush1.bf16.msra.mxu0 0
    %1975 = vmatprep.subr.bf16.mxu0 0
    %1976 = vmatpush1.bf16.msra.mxu0 0
    %1977 = vmatprep.subr.bf16.mxu0 0
    %1978 = vmatpush1.bf16.msra.mxu0 0
    %1979 = vmatprep.mubr.bf16.mxu0 0
    %1980 = vmatmul.mubr.bf16.gmra.mrb[0].mxu0 %v1930
    %v1981 = vpop.f32.mrb[0].mxu0
    %v1982 = vadd.f32 0.0, %v1981
    %v1983 = vpop.f32.mrb[0].mxu0
    %v1984 = vadd.f32 0.0, %v1983
    %v1985 = vpop.f32.mrb[0].mxu0
    %v1986 = vadd.f32 0.0, %v1985
    %v1987 = vpop.f32.mrb[0].mxu0
    %v1988 = vadd.f32 0.0, %v1987
    %1989 = vmatprep.mubr.bf16.mxu0 0
    %1990 = vmatmul.mubr.bf16.gmra.mrb[0].mxu0 %v1933
    %v1991 = vpop.f32.mrb[0].mxu0
    %v1992 = vadd.f32 0.0, %v1991
    %v1993 = vpop.f32.mrb[0].mxu0
    %v1994 = vadd.f32 0.0, %v1993
    %v1995 = vpop.f32.mrb[0].mxu0
    %v1996 = vpop.f32.mrb[0].mxu0
    %1997 = vdwg.mxu0
    %1998 = vmatprep.subr.bf16.mxu0 %v1945
    %1999 = vmatpush1.bf16.msra.mxu0 %v1942
    %2000 = vmatprep.subr.bf16.mxu0 0
    %2001 = vmatpush1.bf16.msra.mxu0 0
    %2002 = vmatprep.subr.bf16.mxu0 0
    %2003 = vmatpush1.bf16.msra.mxu0 0
    %2004 = vmatprep.subr.bf16.mxu0 0
    %2005 = vmatpush1.bf16.msra.mxu0 0
    %2006 = vmatprep.subr.bf16.mxu0 0
    %2007 = vmatpush1.bf16.msra.mxu0 0
    %2008 = vmatprep.subr.bf16.mxu0 0
    %2009 = vmatpush1.bf16.msra.mxu0 0
    %2010 = vmatprep.subr.bf16.mxu0 0
    %2011 = vmatpush1.bf16.msra.mxu0 0
    %2012 = vmatprep.subr.bf16.mxu0 0
    %2013 = vmatpush1.bf16.msra.mxu0 0
    %2014 = vmatprep.subr.bf16.mxu0 0
    %2015 = vmatpush1.bf16.msra.mxu0 0
    %2016 = vmatprep.subr.bf16.mxu0 0
    %2017 = vmatpush1.bf16.msra.mxu0 0
    %2018 = vmatprep.subr.bf16.mxu0 0
    %2019 = vmatpush1.bf16.msra.mxu0 0
    %2020 = vmatprep.subr.bf16.mxu0 0
    %2021 = vmatpush1.bf16.msra.mxu0 0
    %2022 = vmatprep.subr.bf16.mxu0 0
    %2023 = vmatpush1.bf16.msra.mxu0 0
    %2024 = vmatprep.subr.bf16.mxu0 0
    %2025 = vmatpush1.bf16.msra.mxu0 0
    %2026 = vmatprep.subr.bf16.mxu0 0
    %2027 = vmatpush1.bf16.msra.mxu0 0
    %2028 = vmatprep.subr.bf16.mxu0 0
    %2029 = vmatpush1.bf16.msra.mxu0 0
    %2030 = vmatprep.mubr.bf16.mxu0 0
    %2031 = vmatmul.mubr.bf16.gmra.mrb[0].mxu0 %v1930
    %v2032 = vpop.f32.mrb[0].mxu0
    %v2033 = vadd.f32 0.0, %v2032
    %v2034 = vpop.f32.mrb[0].mxu0
    %v2035 = vadd.f32 0.0, %v2034
    %v2036 = vpop.f32.mrb[0].mxu0
    %v2037 = vadd.f32 0.0, %v2036
    %v2038 = vpop.f32.mrb[0].mxu0
    %v2039 = vadd.f32 0.0, %v2038
    %2040 = vmatprep.mubr.bf16.mxu0 0
    %2041 = vmatmul.mubr.bf16.gmra.mrb[0].mxu0 %v1933
    %v2042 = vpop.f32.mrb[0].mxu0
    %v2043 = vadd.f32 0.0, %v2042
    %v2044 = vpop.f32.mrb[0].mxu0
    %v2045 = vadd.f32 0.0, %v2044
    %v2046 = vpop.f32.mrb[0].mxu0
    %v2047 = vpop.f32.mrb[0].mxu0
    %2048 = vdwg.mxu0
    %v2049 = vadd.f32 %v1986, %v329
    %v2050 = vadd.f32 %v1988, %v329
    %v2051 = vadd.f32 %v2037, %v329
    %v2052 = vadd.f32 %v2039, %v329
    %v2053 = vadd.f32 %v1992, %v334
    %v2054 = vadd.f32 %v1994, %v334
    %v2055 = vadd.f32 %v2043, %v334
    %v2056 = vadd.f32 %v2045, %v334
    %2057 = vst [vmem:[#allocation11 + $0x18] sm:$0xff] %v2049
    %2058 = vst [vmem:[#allocation11 + $0x20] sm:$0xff] %v2050
    %2059 = vst [vmem:[#allocation11 + $0x28] sm:$0xff] %v2051
    %2060 = vst [vmem:[#allocation11 + $0x30] sm:$0xff] %v2052
    %2061 = vst [vmem:[#allocation11 + $0x50] sm:$0xf] %v2053
    %2062 = vst [vmem:[#allocation11 + $0x58] sm:$0xf] %v2054
    %2063 = vst [vmem:[#allocation11 + $0x60] sm:$0xf] %v2055
    %2064 = vst [vmem:[#allocation11 + $0x68] sm:$0xf] %v2056
    %v2065 = vadd.f32 %v1667, %v1982
    %v2066 = vadd.f32 %v1668, %v1984
    %v2067 = vadd.f32 %v1669, %v2033
    %v2068 = vadd.f32 %v1670, %v2035
    %v2069 = vld [vmem:[%s9] sm:$0xff]
    %2071 = vset.pattern.permute.xlu0 0
    %2072 = vperm.xlu0 %2071, %v2069
    %v2073 = vpop.permute.xlu0 %2072
    %v2075 = vadd.f32 %v2065, %v2073
    %v2076 = vadd.f32 %v2066, %v2073
    %v2077 = vadd.f32 %v2067, %v2073
    %v2078 = vadd.f32 %v2068, %v2073
    %v2079 = vmax.f32 %v2075, 0.0
    %v2080 = vmax.f32 %v2076, 0.0
    %v2081 = vmax.f32 %v2077, 0.0
    %v2082 = vmax.f32 %v2078, 0.0
    %2083 = vst [vmem:[#allocation12] sm:$0xff] %v2079
    %2084 = vst [vmem:[#allocation12 + $0x8] sm:$0xff] %v2080
    %2085 = vst [vmem:[#allocation12 + $0x10] sm:$0xff] %v2081
    %2086 = vst [vmem:[#allocation12 + $0x18] sm:$0xff] %v2082
    // Predicated region
    $region74: #{tpu_custom_call.1} parent=1 // pred_check
      _
    $region75: #{tpu_custom_call.1} parent=1 // pred_check_branch
      %2088 = sbr.rel (0) target = $region77
    $region76: #{tpu_custom_call.1} parent=1 // pred_region
      %s2090 = ssub.s32 1792, 1792
      %2091 = vsyncadd [#allocation4], %s2090
      %s2092 = sshll.u32 [#allocation11], 4
      %s2093 = int_to_ptr.vmem [resolvable:$true] %s2092
      %2098 = dma.vmem_to_hbm [thread:$0]  %s2093, 1792, %s13, [#allocation4], 896, 896, 56
    $region77: #{tpu_custom_call.1} parent=1 // pred_fallthru
      _
    // Predicated region
    $region78: #{tpu_custom_call.1} parent=1 // pred_check
      _
    $region79: #{tpu_custom_call.1} parent=1 // pred_check_branch
      %2100 = sbr.rel (0) target = $region81
    $region80: #{tpu_custom_call.1} parent=1 // pred_region
      %s2102 = ssub.s32 512, 512
      %2103 = vsyncadd [#allocation13], %s2102
      %s2105 = sshll.u32 [#allocation12], 4
      %s2106 = int_to_ptr.vmem [resolvable:$true] %s2105
      %2108 = dma.vmem_to_hbm [thread:$0]  %s2106, 512, %s14, [#allocation13]
    $region81: #{tpu_custom_call.1} parent=1 // pred_fallthru
      _
    // Predicated region
    $region82: #{tpu_custom_call.1} parent=1 // pred_check
      _
    $region83: #{tpu_custom_call.1} parent=1 // pred_check_branch
      %2110 = sbr.rel (0) target = $region85
    $region84: #{tpu_custom_call.1} parent=1 // pred_region
      %2111 = dma.done [#allocation4], 1792
    $region85: #{tpu_custom_call.1} parent=1 // pred_fallthru
      _
    // Predicated region
    $region86: #{tpu_custom_call.1} parent=1 // pred_check
      _
    $region87: #{tpu_custom_call.1} parent=1 // pred_check_branch
      %2113 = sbr.rel (0) target = $region89
    $region88: #{tpu_custom_call.1} parent=1 // pred_region
      %2114 = dma.done [#allocation13], 512
    $region89: #{tpu_custom_call.1} parent=1 // pred_fallthru
      _
    %2115 = vsyncpa [#allocation3], 1
    %2116 = vsyncpa [#allocation6], 1
    %2117 = vsyncpa [#allocation9], 1
    %2118 = vsyncpa [#allocation4], 1
    %2119 = vsyncpa [#allocation13], 1

</llo_original>
